<compile_context>
chip_gen: v5e
topology: v5e:2x2
jax: 0.10.0
libtpu: 0.0.40
codegen_flags: <defaults>
</compile_context>

<pallas_src>
import functools
import math

import jax
import jax.numpy as jnp
from jax.experimental import pallas as pl
from jax.experimental.pallas import tpu as pltpu


_TM_CAP = 512                    # patch-row tile cap (multiple of 8)
_VMEM_LIMIT = 32 * 1024 * 1024   # explicit, safe on v5e/v6e/v7x


def _round_up(x, m):
    return (x + m - 1) // m * m


def _pick_tile(m, cap=_TM_CAP, min_steps=2):
    """Rows-per-tile (multiple of 8) and grid-step count for m rows.

    Chooses tm = round_up(ceil(m/steps), 8) so padding is small, and forces
    >= min_steps steps when m allows (>8 rows) so both v7x TensorCores get
    work on the "parallel" grid axis.
    """
    cap = max(8, (cap // 8) * 8)
    want = max(min_steps, -(-m // cap))        # enough steps to respect cap
    steps = min(want, max(1, -(-m // 8)))      # each step needs >= 8 real rows
    tm = _round_up(-(-m // steps), 8)
    return tm, steps


# ---------------------------------------------------------------------------
# Pallas kernels
# ---------------------------------------------------------------------------
def _conv_relu_pool_kernel(p_ref, w_ref, b_ref, o_ref):
    """Fused conv(im2col matmul) + bias + ReLU + 2x2 max-pool.

    p_ref: (4, TM, Kpad) bf16 -- axis 0 is the tap-within-pool-window index,
           axis 1 indexes pool windows (ordered n, ho/2, wo/2).
    w_ref: (Kpad, Npad) bf16   b_ref: (1, Npad) f32   o_ref: (TM, Npad) bf16
    """
    tm = o_ref.shape[0]
    kpad = p_ref.shape[2]
    # One MXU dot with M = 4*TM keeps the weight tile resident instead of
    # re-streaming it 4x.  The reshape is layout-preserving (TM % 8 == 0,
    # Kpad % 128 == 0).
    p2d = p_ref[...].reshape(4 * tm, kpad)
    d = jnp.dot(p2d, w_ref[...], preferred_element_type=jnp.float32)
    d0 = d[0 * tm:1 * tm]
    d1 = d[1 * tm:2 * tm]
    d2 = d[2 * tm:3 * tm]
    d3 = d[3 * tm:4 * tm]
    # max/ReLU commute and the bias is shared by all 4 taps, so
    # relu(max(d_t) + b) == max_t(relu(d_t + b)) (PyTorch relu-then-pool).
    m = jnp.maximum(jnp.maximum(d0, d1), jnp.maximum(d2, d3))
    o_ref[...] = jnp.maximum(m + b_ref[...], 0.0).astype(o_ref.dtype)


def _c5_fc_kernel(p_ref, w5_ref, b5_ref, wf_ref, bf_ref, o_ref):
    """Fused c5 (conv collapsed to matmul) + ReLU + fc, chained on the MXU.

    p_ref: (TB, K5pad) bf16   w5_ref: (K5pad, Hpad) bf16   b5_ref: (1, Hpad) f32
    wf_ref: (Hpad, Cpad) bf16 bf_ref: (1, Cpad) f32        o_ref: (TB, Cpad) f32
    """
    h = jnp.dot(p_ref[...], w5_ref[...], preferred_element_type=jnp.float32)
    h = jnp.maximum(h + b5_ref[...], 0.0)
    out = jnp.dot(h.astype(jnp.bfloat16), wf_ref[...],
                  preferred_element_type=jnp.float32)
    o_ref[...] = (out + bf_ref[...]).astype(o_ref.dtype)


# ---------------------------------------------------------------------------
# Glue: patch extraction (data movement only, all in bf16)
# ---------------------------------------------------------------------------
def _im2col(x, kh, kw):
    """x: NHWC -> (N, Ho, Wo, kh*kw*C) patches ordered (kh, kw, cin)."""
    N, H, W, C = x.shape
    Ho, Wo = H - kh + 1, W - kw + 1
    taps = [x[:, i:i + Ho, j:j + Wo, :] for i in range(kh) for j in range(kw)]
    return jnp.concatenate(taps, axis=-1)


def _pooled_patches(x, kh, kw):
    """Patches pre-grouped by 2x2 pool-window tap, built directly in the
    final (pool-tap, n, hp, wp, K) order (no 6-D transpose copy).

    Returns (4, N*Hp*Wp, kh*kw*C) with K ordered (kh, kw, cin), plus (N,Hp,Wp).
    """
    N, H, W, C = x.shape
    Ho, Wo = H - kh + 1, W - kw + 1
    Hp, Wp = Ho // 2, Wo // 2
    K = kh * kw * C
    slabs = []
    for a in range(2):
        for b in range(2):
            taps = [
                x[:, a + i:a + i + 2 * Hp:2, b + j:b + j + 2 * Wp:2, :]
                for i in range(kh) for j in range(kw)
            ]
            slab = jnp.concatenate(taps, axis=-1)       # (N, Hp, Wp, K)
            slabs.append(slab.reshape(N * Hp * Wp, K))
    return jnp.stack(slabs, axis=0), (N, Hp, Wp)        # (4, Mo, K)


# ---------------------------------------------------------------------------
# Pallas wrappers
# ---------------------------------------------------------------------------
def _conv_relu_pool(x, w_packed, b_packed, kh, kw, cout):
    """Conv(kh,kw) + ReLU + MaxPool(2,2) on bf16 NHWC x -> pooled bf16 NHWC."""
    p, (N, Hp, Wp) = _pooled_patches(x, kh, kw)         # (4, Mo, K) bf16
    Mo, K = p.shape[1], p.shape[2]
    Kpad, Npad = w_packed.shape

    tm, steps = _pick_tile(Mo)
    Mo_pad = tm * steps
    p = jnp.pad(p, ((0, 0), (0, Mo_pad - Mo), (0, Kpad - K)))

    out = pl.pallas_call(
        _conv_relu_pool_kernel,
        out_shape=jax.ShapeDtypeStruct((Mo_pad, Npad), jnp.bfloat16),
        grid=(steps,),
        in_specs=[
            pl.BlockSpec((4, tm, Kpad), lambda i: (0, i, 0)),
            pl.BlockSpec((Kpad, Npad), lambda i: (0, 0)),
            pl.BlockSpec((1, Npad), lambda i: (0, 0)),
        ],
        out_specs=pl.BlockSpec((tm, Npad), lambda i: (i, 0)),
        compiler_params=pltpu.CompilerParams(
            dimension_semantics=("parallel",),
            vmem_limit_bytes=_VMEM_LIMIT,
        ),
    )(p, w_packed, b_packed)

    # Padded rows compute relu(bias) > 0; slice them off before reshaping.
    return out[:Mo, :cout].reshape(N, Hp, Wp, cout)


def _c5_fc(p, w5, b5, wf, bf, classes):
    """p: (N, 400) bf16 -> relu(p @ w5 + b5) @ wf + bf -> (N, classes) f32."""
    N, K = p.shape
    K5pad, Hpad = w5.shape
    Cpad = wf.shape[1]

    tb, steps = _pick_tile(N)
    Np = tb * steps
    p = jnp.pad(p, ((0, Np - N), (0, K5pad - K))).astype(jnp.bfloat16)

    out = pl.pallas_call(
        _c5_fc_kernel,
        out_shape=jax.ShapeDtypeStruct((Np, Cpad), jnp.float32),
        grid=(steps,),
        in_specs=[
            pl.BlockSpec((tb, K5pad), lambda i: (i, 0)),
            pl.BlockSpec((K5pad, Hpad), lambda i: (0, 0)),
            pl.BlockSpec((1, Hpad), lambda i: (0, 0)),
            pl.BlockSpec((Hpad, Cpad), lambda i: (0, 0)),
            pl.BlockSpec((1, Cpad), lambda i: (0, 0)),
        ],
        out_specs=pl.BlockSpec((tb, Cpad), lambda i: (i, 0)),
        compiler_params=pltpu.CompilerParams(
            dimension_semantics=("parallel",),
            vmem_limit_bytes=_VMEM_LIMIT,
        ),
    )(p, w5, b5, wf, bf)

    return out[:N, :classes]


# ---------------------------------------------------------------------------
# Parameters: PyTorch-style init + lane-dense packing for the kernels
# ---------------------------------------------------------------------------
def init_params(key, in_channels=3, classes=10):
    """Raw PyTorch-layout params, uniform(+-1/sqrt(fan_in)) like nn defaults."""
    ks = jax.random.split(key, 8)

    def u(k, shape, fan_in):
        bound = 1.0 / math.sqrt(fan_in)
        return jax.random.uniform(k, shape, jnp.float32, -bound, bound)

    return {
        "c1_w": u(ks[0], (6, in_channels, 5, 5), in_channels * 25),
        "c1_b": u(ks[1], (6,), in_channels * 25),
        "c3_w": u(ks[2], (16, 6, 5, 5), 6 * 25),
        "c3_b": u(ks[3], (16,), 6 * 25),
        "c5_w": u(ks[4], (120, 16, 5, 5), 16 * 25),
        "c5_b": u(ks[5], (120,), 16 * 25),
        "fc_w": u(ks[6], (classes, 120), 120),
        "fc_b": u(ks[7], (classes,), 120),
    }


def _pack_conv(w, b):
    """(Cout,Cin,KH,KW) -> bf16 (Kpad, Npad) matching im2col (kh,kw,cin) order."""
    cout, cin, kh, kw = w.shape
    k = kh * kw * cin
    kpad, npad = _round_up(k, 128), _round_up(cout, 128)
    wm = jnp.transpose(w, (2, 3, 1, 0)).reshape(k, cout)
    wm = jnp.pad(wm, ((0, kpad - k), (0, npad - cout))).astype(jnp.bfloat16)
    bm = jnp.pad(b, (0, npad - cout)).astype(jnp.float32).reshape(1, npad)
    return wm, bm


def pack_params(params, classes):
    packed = {}
    packed["c1_w"], packed["c1_b"] = _pack_conv(params["c1_w"], params["c1_b"])
    packed["c3_w"], packed["c3_b"] = _pack_conv(params["c3_w"], params["c3_b"])
    packed["c5_w"], packed["c5_b"] = _pack_conv(params["c5_w"], params["c5_b"])
    hpad = _round_up(120, 128)
    cpad = _round_up(classes, 128)
    wf = jnp.transpose(params["fc_w"])                       # (120, classes)
    wf = jnp.pad(wf, ((0, hpad - 120), (0, cpad - classes))).astype(jnp.bfloat16)
    bf = jnp.pad(params["fc_b"], (0, cpad - classes)).astype(jnp.float32)
    packed["fc_w"], packed["fc_b"] = wf, bf.reshape(1, cpad)
    return packed


# ---------------------------------------------------------------------------
# Full forward pass (LeNet4)
# ---------------------------------------------------------------------------
def lenet4_forward(x_nchw, packed, *, classes=10):
    # NCHW -> NHWC, cast to bf16 ONCE so all downstream patch glue is bf16.
    x = jnp.transpose(x_nchw, (0, 2, 3, 1)).astype(jnp.bfloat16)

    # c1 + relu1 + s2 (fused conv/relu/pool kernel, bf16 out)
    y = _conv_relu_pool(x, packed["c1_w"], packed["c1_b"], 5, 5, 6)
    # c3 + relu3 + s4
    y = _conv_relu_pool(y, packed["c3_w"], packed["c3_b"], 5, 5, 16)

    # c5 + relu5 + flatten + fc, fused in one kernel (spatial collapses to 1x1
    # for 32x32 input, so c5 is a plain (N, 400) @ (400, 120) matmul).
    p = _im2col(y, 5, 5)
    N = p.shape[0]
    p = p.reshape(N, p.shape[1] * p.shape[2] * p.shape[3])        # (N, 400)
    out = _c5_fc(p, packed["c5_w"], packed["c5_b"],
                 packed["fc_w"], packed["fc_b"], classes)
    return out


# ---------------------------------------------------------------------------
if __name__ == "__main__":
    key = jax.random.PRNGKey(0)
    pkey, xkey = jax.random.split(key)

    num_channels, num_classes, batch = 3, 10, 2
    params = init_params(pkey, in_channels=num_channels, classes=num_classes)
    packed = pack_params(params, num_classes)

    # LeNet4 requires 32x32 spatial input so that c5 produces 120 features.
    x = jax.random.normal(xkey, (batch, num_channels, 32, 32), jnp.float32)

    fwd = jax.jit(functools.partial(lenet4_forward, classes=num_classes))
    out = jax.block_until_ready(fwd(x, packed))

    assert out.shape == (batch, num_classes), out.shape
    assert bool(jnp.all(jnp.isfinite(out)))
    print("KERNEL_OK")
</pallas_src>

<mosaic_0001>
module attributes {stable_mosaic.version = 11 : i64} {
  func.func @_conv_relu_pool_kernel(%arg0: i32, %arg1: memref<4x200x128xbf16, #tpu.memory_space<vmem>>, %arg2: memref<128x128xbf16, #tpu.memory_space<vmem>>, %arg3: memref<1x128xf32, #tpu.memory_space<vmem>>, %arg4: memref<200x128xbf16, #tpu.memory_space<vmem>>) attributes {dimension_semantics = [#tpu.dimension_semantics<parallel>], iteration_bounds = array<i64: 2>, scalar_prefetch = 0 : i64, scratch_operands = 0 : i64, tpu.core_type = #tpu.core_type<tc>, window_params = [{transform_indices = @transform_0, window_bounds = array<i64: 4, 200, 128>}, {pipeline_mode = #tpu.pipeline_mode<synchronous>, transform_indices = @transform_1, window_bounds = array<i64: 128, 128>}, {pipeline_mode = #tpu.pipeline_mode<synchronous>, transform_indices = @transform_2, window_bounds = array<i64: 1, 128>}, {transform_indices = @transform_3, window_bounds = array<i64: 200, 128>}]} {
    %c0 = arith.constant 0 : index
    %c0_0 = arith.constant 0 : index
    %c0_1 = arith.constant 0 : index
    %0 = vector.load %arg1[%c0, %c0_0, %c0_1] : memref<4x200x128xbf16, #tpu.memory_space<vmem>>, vector<4x200x128xbf16>
    %1 = vector.shape_cast %0 : vector<4x200x128xbf16> to vector<800x128xbf16>
    %c0_2 = arith.constant 0 : index
    %c0_3 = arith.constant 0 : index
    %2 = vector.load %arg2[%c0_2, %c0_3] : memref<128x128xbf16, #tpu.memory_space<vmem>>, vector<128x128xbf16>
    %cst = arith.constant dense<0.000000e+00> : vector<800x128xf32>
    %3 = tpu.matmul %1, %2, %cst {dimension_numbers = #tpu.dot_dimension_numbers<[1], [0], [0], [1], [0, 0, 1, 1], [], []>} : vector<800x128xbf16>, vector<128x128xbf16>, vector<800x128xf32> -> vector<800x128xf32>
    %4 = vector.extract_strided_slice %3 {offsets = [0, 0], sizes = [200, 128], strides = [1, 1]} : vector<800x128xf32> to vector<200x128xf32>
    %5 = vector.extract_strided_slice %3 {offsets = [200, 0], sizes = [200, 128], strides = [1, 1]} : vector<800x128xf32> to vector<200x128xf32>
    %6 = vector.extract_strided_slice %3 {offsets = [400, 0], sizes = [200, 128], strides = [1, 1]} : vector<800x128xf32> to vector<200x128xf32>
    %7 = vector.extract_strided_slice %3 {offsets = [600, 0], sizes = [200, 128], strides = [1, 1]} : vector<800x128xf32> to vector<200x128xf32>
    %8 = arith.maximumf %4, %5 : vector<200x128xf32>
    %9 = arith.maximumf %6, %7 : vector<200x128xf32>
    %10 = arith.maximumf %8, %9 : vector<200x128xf32>
    %c0_4 = arith.constant 0 : index
    %c0_5 = arith.constant 0 : index
    %11 = vector.load %arg3[%c0_4, %c0_5] : memref<1x128xf32, #tpu.memory_space<vmem>>, vector<1x128xf32>
    %12 = vector.broadcast %11 : vector<1x128xf32> to vector<200x128xf32>
    %13 = arith.addf %10, %12 : vector<200x128xf32>
    %cst_6 = arith.constant 0.000000e+00 : f32
    %14 = vector.broadcast %cst_6 : f32 to vector<200x128xf32>
    %15 = arith.maximumf %13, %14 : vector<200x128xf32>
    %16 = arith.truncf %15 : vector<200x128xf32> to vector<200x128xbf16>
    %c0_7 = arith.constant 0 : index
    %c0_8 = arith.constant 0 : index
    %17 = vector.load %arg4[%c0_7, %c0_8] : memref<200x128xbf16, #tpu.memory_space<vmem>>, vector<200x128xbf16>
    tpu.vector_store %arg4[%c0_7, %c0_8], %16 {strides = array<i32>} : memref<200x128xbf16, #tpu.memory_space<vmem>>, vector<200x128xbf16>,
    return
  }
  func.func @transform_0(%arg0: i32) -> (i32, i32, i32) {
    %c0_i32 = arith.constant 0 : i32
    %c0_i32_0 = arith.constant 0 : i32
    %c0_i32_1 = arith.constant 0 : i32
    return %c0_i32, %arg0, %c0_i32_0 : i32, i32, i32
  }
  func.func @transform_1(%arg0: i32) -> (i32, i32) {
    %c0_i32 = arith.constant 0 : i32
    %c0_i32_0 = arith.constant 0 : i32
    %c0_i32_1 = arith.constant 0 : i32
    return %c0_i32, %c0_i32_0 : i32, i32
  }
  func.func @transform_2(%arg0: i32) -> (i32, i32) {
    %c0_i32 = arith.constant 0 : i32
    %c0_i32_0 = arith.constant 0 : i32
    %c0_i32_1 = arith.constant 0 : i32
    return %c0_i32, %c0_i32_0 : i32, i32
  }
  func.func @transform_3(%arg0: i32) -> (i32, i32) {
    %c0_i32 = arith.constant 0 : i32
    %c0_i32_0 = arith.constant 0 : i32
    return %arg0, %c0_i32 : i32, i32
  }
}

module attributes {stable_mosaic.version = 11 : i64} {
  func.func @_conv_relu_pool_kernel(%arg0: i32, %arg1: memref<4x32x256xbf16, #tpu.memory_space<vmem>>, %arg2: memref<256x128xbf16, #tpu.memory_space<vmem>>, %arg3: memref<1x128xf32, #tpu.memory_space<vmem>>, %arg4: memref<32x128xbf16, #tpu.memory_space<vmem>>) attributes {dimension_semantics = [#tpu.dimension_semantics<parallel>], iteration_bounds = array<i64: 2>, scalar_prefetch = 0 : i64, scratch_operands = 0 : i64, tpu.core_type = #tpu.core_type<tc>, window_params = [{transform_indices = @transform_0, window_bounds = array<i64: 4, 32, 256>}, {pipeline_mode = #tpu.pipeline_mode<synchronous>, transform_indices = @transform_1, window_bounds = array<i64: 256, 128>}, {pipeline_mode = #tpu.pipeline_mode<synchronous>, transform_indices = @transform_2, window_bounds = array<i64: 1, 128>}, {transform_indices = @transform_3, window_bounds = array<i64: 32, 128>}]} {
    %c0 = arith.constant 0 : index
    %c0_0 = arith.constant 0 : index
    %c0_1 = arith.constant 0 : index
    %0 = vector.load %arg1[%c0, %c0_0, %c0_1] : memref<4x32x256xbf16, #tpu.memory_space<vmem>>, vector<4x32x256xbf16>
    %1 = vector.shape_cast %0 : vector<4x32x256xbf16> to vector<128x256xbf16>
    %c0_2 = arith.constant 0 : index
    %c0_3 = arith.constant 0 : index
    %2 = vector.load %arg2[%c0_2, %c0_3] : memref<256x128xbf16, #tpu.memory_space<vmem>>, vector<256x128xbf16>
    %cst = arith.constant dense<0.000000e+00> : vector<128x128xf32>
    %3 = tpu.matmul %1, %2, %cst {dimension_numbers = #tpu.dot_dimension_numbers<[1], [0], [0], [1], [0, 0, 1, 1], [], []>} : vector<128x256xbf16>, vector<256x128xbf16>, vector<128x128xf32> -> vector<128x128xf32>
    %4 = vector.extract_strided_slice %3 {offsets = [0, 0], sizes = [32, 128], strides = [1, 1]} : vector<128x128xf32> to vector<32x128xf32>
    %5 = vector.extract_strided_slice %3 {offsets = [32, 0], sizes = [32, 128], strides = [1, 1]} : vector<128x128xf32> to vector<32x128xf32>
    %6 = vector.extract_strided_slice %3 {offsets = [64, 0], sizes = [32, 128], strides = [1, 1]} : vector<128x128xf32> to vector<32x128xf32>
    %7 = vector.extract_strided_slice %3 {offsets = [96, 0], sizes = [32, 128], strides = [1, 1]} : vector<128x128xf32> to vector<32x128xf32>
    %8 = arith.maximumf %4, %5 : vector<32x128xf32>
    %9 = arith.maximumf %6, %7 : vector<32x128xf32>
    %10 = arith.maximumf %8, %9 : vector<32x128xf32>
    %c0_4 = arith.constant 0 : index
    %c0_5 = arith.constant 0 : index
    %11 = vector.load %arg3[%c0_4, %c0_5] : memref<1x128xf32, #tpu.memory_space<vmem>>, vector<1x128xf32>
    %12 = vector.broadcast %11 : vector<1x128xf32> to vector<32x128xf32>
    %13 = arith.addf %10, %12 : vector<32x128xf32>
    %cst_6 = arith.constant 0.000000e+00 : f32
    %14 = vector.broadcast %cst_6 : f32 to vector<32x128xf32>
    %15 = arith.maximumf %13, %14 : vector<32x128xf32>
    %16 = arith.truncf %15 : vector<32x128xf32> to vector<32x128xbf16>
    %c0_7 = arith.constant 0 : index
    %c0_8 = arith.constant 0 : index
    %17 = vector.load %arg4[%c0_7, %c0_8] : memref<32x128xbf16, #tpu.memory_space<vmem>>, vector<32x128xbf16>
    tpu.vector_store %arg4[%c0_7, %c0_8], %16 {strides = array<i32>} : memref<32x128xbf16, #tpu.memory_space<vmem>>, vector<32x128xbf16>,
    return
  }
  func.func @transform_0(%arg0: i32) -> (i32, i32, i32) {
    %c0_i32 = arith.constant 0 : i32
    %c0_i32_0 = arith.constant 0 : i32
    %c0_i32_1 = arith.constant 0 : i32
    return %c0_i32, %arg0, %c0_i32_0 : i32, i32, i32
  }
  func.func @transform_1(%arg0: i32) -> (i32, i32) {
    %c0_i32 = arith.constant 0 : i32
    %c0_i32_0 = arith.constant 0 : i32
    %c0_i32_1 = arith.constant 0 : i32
    return %c0_i32, %c0_i32_0 : i32, i32
  }
  func.func @transform_2(%arg0: i32) -> (i32, i32) {
    %c0_i32 = arith.constant 0 : i32
    %c0_i32_0 = arith.constant 0 : i32
    %c0_i32_1 = arith.constant 0 : i32
    return %c0_i32, %c0_i32_0 : i32, i32
  }
  func.func @transform_3(%arg0: i32) -> (i32, i32) {
    %c0_i32 = arith.constant 0 : i32
    %c0_i32_0 = arith.constant 0 : i32
    return %arg0, %c0_i32 : i32, i32
  }
}

module attributes {stable_mosaic.version = 11 : i64} {
  func.func @_c5_fc_kernel(%arg0: i32, %arg1: memref<8x512xbf16, #tpu.memory_space<vmem>>, %arg2: memref<512x128xbf16, #tpu.memory_space<vmem>>, %arg3: memref<1x128xf32, #tpu.memory_space<vmem>>, %arg4: memref<128x128xbf16, #tpu.memory_space<vmem>>, %arg5: memref<1x128xf32, #tpu.memory_space<vmem>>, %arg6: memref<8x128xf32, #tpu.memory_space<vmem>>) attributes {dimension_semantics = [#tpu.dimension_semantics<parallel>], iteration_bounds = array<i64: 1>, scalar_prefetch = 0 : i64, scratch_operands = 0 : i64, tpu.core_type = #tpu.core_type<tc>, window_params = [{transform_indices = @transform_0, window_bounds = array<i64: 8, 512>}, {pipeline_mode = #tpu.pipeline_mode<synchronous>, transform_indices = @transform_1, window_bounds = array<i64: 512, 128>}, {pipeline_mode = #tpu.pipeline_mode<synchronous>, transform_indices = @transform_2, window_bounds = array<i64: 1, 128>}, {pipeline_mode = #tpu.pipeline_mode<synchronous>, transform_indices = @transform_3, window_bounds = array<i64: 128, 128>}, {pipeline_mode = #tpu.pipeline_mode<synchronous>, transform_indices = @transform_4, window_bounds = array<i64: 1, 128>}, {transform_indices = @transform_5, window_bounds = array<i64: 8, 128>}]} {
    %c0 = arith.constant 0 : index
    %c0_0 = arith.constant 0 : index
    %0 = vector.load %arg1[%c0, %c0_0] : memref<8x512xbf16, #tpu.memory_space<vmem>>, vector<8x512xbf16>
    %c0_1 = arith.constant 0 : index
    %c0_2 = arith.constant 0 : index
    %1 = vector.load %arg2[%c0_1, %c0_2] : memref<512x128xbf16, #tpu.memory_space<vmem>>, vector<512x128xbf16>
    %cst = arith.constant dense<0.000000e+00> : vector<8x128xf32>
    %2 = tpu.matmul %0, %1, %cst {dimension_numbers = #tpu.dot_dimension_numbers<[1], [0], [0], [1], [0, 0, 1, 1], [], []>} : vector<8x512xbf16>, vector<512x128xbf16>, vector<8x128xf32> -> vector<8x128xf32>
    %c0_3 = arith.constant 0 : index
    %c0_4 = arith.constant 0 : index
    %3 = vector.load %arg3[%c0_3, %c0_4] : memref<1x128xf32, #tpu.memory_space<vmem>>, vector<1x128xf32>
    %4 = vector.broadcast %3 : vector<1x128xf32> to vector<8x128xf32>
    %5 = arith.addf %2, %4 : vector<8x128xf32>
    %cst_5 = arith.constant 0.000000e+00 : f32
    %6 = vector.broadcast %cst_5 : f32 to vector<8x128xf32>
    %7 = arith.maximumf %5, %6 : vector<8x128xf32>
    %8 = arith.truncf %7 : vector<8x128xf32> to vector<8x128xbf16>
    %c0_6 = arith.constant 0 : index
    %c0_7 = arith.constant 0 : index
    %9 = vector.load %arg4[%c0_6, %c0_7] : memref<128x128xbf16, #tpu.memory_space<vmem>>, vector<128x128xbf16>
    %cst_8 = arith.constant dense<0.000000e+00> : vector<8x128xf32>
    %10 = tpu.matmul %8, %9, %cst_8 {dimension_numbers = #tpu.dot_dimension_numbers<[1], [0], [0], [1], [0, 0, 1, 1], [], []>} : vector<8x128xbf16>, vector<128x128xbf16>, vector<8x128xf32> -> vector<8x128xf32>
    %c0_9 = arith.constant 0 : index
    %c0_10 = arith.constant 0 : index
    %11 = vector.load %arg5[%c0_9, %c0_10] : memref<1x128xf32, #tpu.memory_space<vmem>>, vector<1x128xf32>
    %12 = vector.broadcast %11 : vector<1x128xf32> to vector<8x128xf32>
    %13 = arith.addf %10, %12 : vector<8x128xf32>
    %c0_11 = arith.constant 0 : index
    %c0_12 = arith.constant 0 : index
    %14 = vector.load %arg6[%c0_11, %c0_12] : memref<8x128xf32, #tpu.memory_space<vmem>>, vector<8x128xf32>
    tpu.vector_store %arg6[%c0_11, %c0_12], %13 {strides = array<i32>} : memref<8x128xf32, #tpu.memory_space<vmem>>, vector<8x128xf32>,
    return
  }
  func.func @transform_0(%arg0: i32) -> (i32, i32) {
    %c0_i32 = arith.constant 0 : i32
    %c0_i32_0 = arith.constant 0 : i32
    return %arg0, %c0_i32 : i32, i32
  }
  func.func @transform_1(%arg0: i32) -> (i32, i32) {
    %c0_i32 = arith.constant 0 : i32
    %c0_i32_0 = arith.constant 0 : i32
    %c0_i32_1 = arith.constant 0 : i32
    return %c0_i32, %c0_i32_0 : i32, i32
  }
  func.func @transform_2(%arg0: i32) -> (i32, i32) {
    %c0_i32 = arith.constant 0 : i32
    %c0_i32_0 = arith.constant 0 : i32
    %c0_i32_1 = arith.constant 0 : i32
    return %c0_i32, %c0_i32_0 : i32, i32
  }
  func.func @transform_3(%arg0: i32) -> (i32, i32) {
    %c0_i32 = arith.constant 0 : i32
    %c0_i32_0 = arith.constant 0 : i32
    %c0_i32_1 = arith.constant 0 : i32
    return %c0_i32, %c0_i32_0 : i32, i32
  }
  func.func @transform_4(%arg0: i32) -> (i32, i32) {
    %c0_i32 = arith.constant 0 : i32
    %c0_i32_0 = arith.constant 0 : i32
    %c0_i32_1 = arith.constant 0 : i32
    return %c0_i32, %c0_i32_0 : i32, i32
  }
  func.func @transform_5(%arg0: i32) -> (i32, i32) {
    %c0_i32 = arith.constant 0 : i32
    %c0_i32_0 = arith.constant 0 : i32
    return %arg0, %c0_i32 : i32, i32
  }
}

</mosaic_0001>

<llo_original>
// kernel: lenet4_forward.3
$region0: #{lenet4_forward.3}
  #allocation0 [shape = 'u32[]', space=smem, size = 0x4, offset = 0x4, fixed_abs, tag = 'smem constant byte address 0x4 - core index']
  #allocation1 [shape = 'u32[72,128]{1,0:T(1,128)}', space=vmem, size = 0x9000, scoped, tag = 'internal scratch']
  %s0 = inlined_call_operand.vmem [shape: bf16[4,400,128], index: 0, kind: input, shape index: {}]
  %s1 = inlined_call_operand.vmem [shape: bf16[128,128], index: 1, kind: input, shape index: {}]
  %s2 = inlined_call_operand.vmem [shape: f32[1,128], index: 2, kind: input, shape index: {}]
  %s3 = inlined_call_operand.vmem [shape: bf16[400,128], index: 3, kind: output, shape index: {}]
  %s4 = sld [smem:[#allocation0]]
  $region86: #{lenet4_forward.3} parent=0
    _
  %s6 = ssub.s32 1, %s4
  %s7 = scalar_select 0, %s6, %s4
  $region1: #{lenet4_forward.3} parent=0
    #allocation2 [shape = 'u8[409600]{0}', space=vmem, size = 0x64000, scoped, tag = 'input window, operand 0']
    loop: start=0, step=1, limit=4
    $region2: #{lenet4_forward.3} parent=1 // loop_pre_header
      _
    $region3: #{lenet4_forward.3} parent=1 // loop_header
      %s9 = sphi 0, %s13
      %p10 = scmp.ge.s32.totalorder %s9, 4
      %s19 = sphi 0, %s21
      %s22 = sphi 0, %s19
      %s23 = sphi 0, %s22
      %s39 = sphi 0, %s23
      %s43 = sphi 0, %s43
      %s45 = sphi 0, %s43
      %s46 = sphi 0, %s45
      %s60 = sphi 0, %s46
      %s64 = sphi 0, %s64
      %s66 = sphi 0, %s64
      %s67 = sphi 0, %s66
      %s81 = sphi 0, %s67
      %s87 = sphi 0, %s89
      %s90 = sphi 0, %s87
      %s91 = sphi 0, %s90
      %s107 = sphi 0, %s91
    $region4: #{lenet4_forward.3} parent=1 // loop_header_branch
      %12 = sbr.rel (%p10) target = $region8
    $region5: #{lenet4_forward.3} parent=1 // loop_body
      %s14 = ssub.s32 %s9, 1
      %s15 = ssub.s32 %s9, 2
      %s16 = sadd.s32 %s9, 1
      %s17 = ssub.s32 %s9, %s16
      %p18 = scmp.eq.s32.totalorder %s17, 0
      %s20 = sadd.s32 %s19, 1
      %s21 = scalar_select %p18, %s19, %s20
      %p24 = pneg %p18
      %p25 = scmp.eq.s32.totalorder %s9, 1
      %p26 = por %p24, %p25
      %p27 = scmp.ne.s32.totalorder %s19, %s22
      %p28 = scmp.eq.s32.totalorder %s9, 0
      %p29 = por %p27, %p28
      %p30 = scmp.ne.s32.totalorder %s19, %s22
      %p31 = scmp.eq.s32.totalorder %s14, 1
      %p32 = por %p30, %p31
      %p33 = scmp.ne.s32.totalorder %s22, %s23
      %p34 = scmp.eq.s32.totalorder %s14, 0
      %p35 = por %p33, %p34
      %p36 = scmp.ne.s32.totalorder %s22, %s23
      %p37 = scmp.eq.s32.totalorder %s15, 1
      %p38 = por %p36, %p37
      %p40 = scmp.ne.s32.totalorder %s23, %s39
      %p41 = scmp.eq.s32.totalorder %s15, 0
      %p42 = por %p40, %p41
      %s44 = sadd.s32 %s43, 1
      %p47 = scmp.eq.s32.totalorder %s9, 1
      %p48 = scmp.ne.s32.totalorder %s43, %s45
      %p49 = scmp.eq.s32.totalorder %s9, 0
      %p50 = por %p48, %p49
      %p51 = scmp.ne.s32.totalorder %s43, %s45
      %p52 = scmp.eq.s32.totalorder %s14, 1
      %p53 = por %p51, %p52
      %p54 = scmp.ne.s32.totalorder %s45, %s46
      %p55 = scmp.eq.s32.totalorder %s14, 0
      %p56 = por %p54, %p55
      %p57 = scmp.ne.s32.totalorder %s45, %s46
      %p58 = scmp.eq.s32.totalorder %s15, 1
      %p59 = por %p57, %p58
      %p61 = scmp.ne.s32.totalorder %s46, %s60
      %p62 = scmp.eq.s32.totalorder %s15, 0
      %p63 = por %p61, %p62
      %s65 = sadd.s32 %s64, 1
      %p68 = scmp.eq.s32.totalorder %s9, 1
      %p69 = scmp.ne.s32.totalorder %s64, %s66
      %p70 = scmp.eq.s32.totalorder %s9, 0
      %p71 = por %p69, %p70
      %p72 = scmp.ne.s32.totalorder %s64, %s66
      %p73 = scmp.eq.s32.totalorder %s14, 1
      %p74 = por %p72, %p73
      %p75 = scmp.ne.s32.totalorder %s66, %s67
      %p76 = scmp.eq.s32.totalorder %s14, 0
      %p77 = por %p75, %p76
      %p78 = scmp.ne.s32.totalorder %s66, %s67
      %p79 = scmp.eq.s32.totalorder %s15, 1
      %p80 = por %p78, %p79
      %p82 = scmp.ne.s32.totalorder %s67, %s81
      %p83 = scmp.eq.s32.totalorder %s15, 0
      %p84 = por %p82, %p83
      %s85 = ssub.s32 %s9, %s16
      %p86 = scmp.eq.s32.totalorder %s85, 0
      %s88 = sadd.s32 %s87, 1
      %s89 = scalar_select %p86, %s87, %s88
      %p92 = pneg %p86
      %p93 = scmp.eq.s32.totalorder %s9, 1
      %p94 = por %p92, %p93
      %p95 = scmp.ne.s32.totalorder %s87, %s90
      %p96 = scmp.eq.s32.totalorder %s9, 0
      %p97 = por %p95, %p96
      %p98 = scmp.ne.s32.totalorder %s87, %s90
      %p99 = scmp.eq.s32.totalorder %s14, 1
      %p100 = por %p98, %p99
      %p101 = scmp.ne.s32.totalorder %s90, %s91
      %p102 = scmp.eq.s32.totalorder %s14, 0
      %p103 = por %p101, %p102
      %p104 = scmp.ne.s32.totalorder %s90, %s91
      %p105 = scmp.eq.s32.totalorder %s15, 1
      %p106 = por %p104, %p105
      %p108 = scmp.ne.s32.totalorder %s91, %s107
      %p109 = scmp.eq.s32.totalorder %s15, 0
      %p110 = por %p108, %p109
      %p111 = scmp.le.s32.totalorder 1, %s9
      %p112 = scmp.lt.s32.totalorder %s9, 3
      %p113 = pnand %p111, %p112
      %p114 = pneg %p113
      // Predicated region
      $region9: #{lenet4_forward.3} parent=5 // pred_check
        _
      $region10: #{lenet4_forward.3} parent=5 // pred_check_branch
        %116 = sbr.rel (%p113) target = $region12
      $region11: #{lenet4_forward.3} parent=5 // pred_region
        %s117 = ssub.s32 %s9, 1
        // Predicated region
        $region13: #{lenet4_forward.3} parent=11 // pred_check
          %p118 = pneg %p56
        $region14: #{lenet4_forward.3} parent=11 // pred_check_branch
          %120 = sbr.rel (%p118) target = $region16
        $region15: #{lenet4_forward.3} parent=11 // pred_region
          _
        $region16: #{lenet4_forward.3} parent=11 // pred_fallthru
          _
        // Predicated region
        $region17: #{lenet4_forward.3} parent=11 // pred_check
          %p121 = pneg %p77
        $region18: #{lenet4_forward.3} parent=11 // pred_check_branch
          %123 = sbr.rel (%p121) target = $region20
        $region19: #{lenet4_forward.3} parent=11 // pred_region
          _
        $region20: #{lenet4_forward.3} parent=11 // pred_fallthru
          _
      $region12: #{lenet4_forward.3} parent=5 // pred_fallthru
        _
      %p124 = scmp.lt.s32.totalorder %s9, 2
      // Predicated region
      $region21: #{lenet4_forward.3} parent=5 // pred_check
        %p125 = pneg %p124
      $region22: #{lenet4_forward.3} parent=5 // pred_check_branch
        %127 = sbr.rel (%p125) target = $region24
      $region23: #{lenet4_forward.3} parent=5 // pred_region
        // Predicated region
        $region25: #{lenet4_forward.3} parent=23 // pred_check
          %p128 = pneg %p29
        $region26: #{lenet4_forward.3} parent=23 // pred_check_branch
          %130 = sbr.rel (%p128) target = $region28
        $region27: #{lenet4_forward.3} parent=23 // pred_region
          %s131 = sand.u32 %s19, 1
          %s132 = sand.u32 %s19, 1
          %s133 = smul.addr %s132, 400
          %s134 = scalar_lea.vmem [#allocation2], %s133
          %s135 = smul.u32 25, %s9
          %s136 = smul.addr %s135, 4
          %s137 = scalar_lea.vmem %s0, %s136
          // Predicated region
          $region29: #{lenet4_forward.3} parent=27 // pred_check
            _
          $region30: #{lenet4_forward.3} parent=27 // pred_check_branch
            %139 = sbr.rel (0) target = $region32
          $region31: #{lenet4_forward.3} parent=27 // pred_region
            // Predicated region
            $region33: #{lenet4_forward.3} parent=31 // pred_check
              _
            $region34: #{lenet4_forward.3} parent=31 // pred_check_branch
              %141 = sbr.rel target = $region36
            $region35: #{lenet4_forward.3} parent=31 // pred_region
              // Predicated region
              $region48: #{lenet4_forward.3} parent=35 // pred_check
                _
              $region49: #{lenet4_forward.3} parent=35 // pred_check_branch
                %355 = sbr.rel (0) target = $region51
              $region50: #{lenet4_forward.3} parent=35 // pred_region
                loop: start=0, step=1, limit=1
                $region52: #{lenet4_forward.3} parent=50 // loop_pre_header
                  _
                $region53: #{lenet4_forward.3} parent=50 // loop_header
                  %s357 = sphi 0, %s361
                  %p358 = scmp.ge.s32.totalorder %s357, 1
                  %s362 = sphi %s137, %s137
                  %s363 = sphi %s134, %s134
                $region54: #{lenet4_forward.3} parent=50 // loop_header_branch
                  %360 = sbr.rel (%p358) target = $region58
                $region55: #{lenet4_forward.3} parent=50 // loop_body
                  _
                $region56: #{lenet4_forward.3} parent=50 // loop_footer
                  %s361 = sadd.s32 1, %s357
                $region57: #{lenet4_forward.3} parent=50 // loop_footer_branch
                  %356 = sbr.rel target = $region53
                $region58: #{lenet4_forward.3} parent=50 // loop_exit
                  _
                %s365 = ssub.s32 16, 1
                loop: start=0, step=1, limit=1
                $region59: #{lenet4_forward.3} parent=50 // loop_pre_header
                  _
                $region60: #{lenet4_forward.3} parent=50 // loop_header
                  %s367 = sphi 0, %s371
                  %p368 = scmp.ge.s32.totalorder %s367, 1
                  %s372 = sphi %s137, %s137
                  %s373 = sphi %s134, %s134
                $region61: #{lenet4_forward.3} parent=50 // loop_header_branch
                  %370 = sbr.rel (%p368) target = $region65
                $region62: #{lenet4_forward.3} parent=50 // loop_body
                  %v374 = vld [vmem:[%s372] sm:%s365]
                  %375 = vst [vmem:[%s373] sm:%s365] %v374
                  %v376 = vld [vmem:[%s372 + $0x4] sm:%s365]
                  %377 = vst [vmem:[%s373 + $0x4] sm:%s365] %v376
                  %v378 = vld [vmem:[%s372 + $0x8] sm:%s365]
                  %379 = vst [vmem:[%s373 + $0x8] sm:%s365] %v378
                  %v380 = vld [vmem:[%s372 + $0xc] sm:%s365]
                  %381 = vst [vmem:[%s373 + $0xc] sm:%s365] %v380
                  %v382 = vld [vmem:[%s372 + $0x10] sm:%s365]
                  %383 = vst [vmem:[%s373 + $0x10] sm:%s365] %v382
                  %v384 = vld [vmem:[%s372 + $0x14] sm:%s365]
                  %385 = vst [vmem:[%s373 + $0x14] sm:%s365] %v384
                  %v386 = vld [vmem:[%s372 + $0x18] sm:%s365]
                  %387 = vst [vmem:[%s373 + $0x18] sm:%s365] %v386
                  %v388 = vld [vmem:[%s372 + $0x1c] sm:%s365]
                  %389 = vst [vmem:[%s373 + $0x1c] sm:%s365] %v388
                  %v390 = vld [vmem:[%s372 + $0x20] sm:%s365]
                  %391 = vst [vmem:[%s373 + $0x20] sm:%s365] %v390
                  %v392 = vld [vmem:[%s372 + $0x24] sm:%s365]
                  %393 = vst [vmem:[%s373 + $0x24] sm:%s365] %v392
                  %v394 = vld [vmem:[%s372 + $0x28] sm:%s365]
                  %395 = vst [vmem:[%s373 + $0x28] sm:%s365] %v394
                  %v396 = vld [vmem:[%s372 + $0x2c] sm:%s365]
                  %397 = vst [vmem:[%s373 + $0x2c] sm:%s365] %v396
                  %v398 = vld [vmem:[%s372 + $0x30] sm:%s365]
                  %399 = vst [vmem:[%s373 + $0x30] sm:%s365] %v398
                  %v400 = vld [vmem:[%s372 + $0x34] sm:%s365]
                  %401 = vst [vmem:[%s373 + $0x34] sm:%s365] %v400
                  %v402 = vld [vmem:[%s372 + $0x38] sm:%s365]
                  %403 = vst [vmem:[%s373 + $0x38] sm:%s365] %v402
                  %v404 = vld [vmem:[%s372 + $0x3c] sm:%s365]
                  %405 = vst [vmem:[%s373 + $0x3c] sm:%s365] %v404
                  %v406 = vld [vmem:[%s372 + $0x40] sm:%s365]
                  %407 = vst [vmem:[%s373 + $0x40] sm:%s365] %v406
                  %v408 = vld [vmem:[%s372 + $0x44] sm:%s365]
                  %409 = vst [vmem:[%s373 + $0x44] sm:%s365] %v408
                  %v410 = vld [vmem:[%s372 + $0x48] sm:%s365]
                  %411 = vst [vmem:[%s373 + $0x48] sm:%s365] %v410
                  %v412 = vld [vmem:[%s372 + $0x4c] sm:%s365]
                  %413 = vst [vmem:[%s373 + $0x4c] sm:%s365] %v412
                  %v414 = vld [vmem:[%s372 + $0x50] sm:%s365]
                  %415 = vst [vmem:[%s373 + $0x50] sm:%s365] %v414
                  %v416 = vld [vmem:[%s372 + $0x54] sm:%s365]
                  %417 = vst [vmem:[%s373 + $0x54] sm:%s365] %v416
                  %v418 = vld [vmem:[%s372 + $0x58] sm:%s365]
                  %419 = vst [vmem:[%s373 + $0x58] sm:%s365] %v418
                  %v420 = vld [vmem:[%s372 + $0x5c] sm:%s365]
                  %421 = vst [vmem:[%s373 + $0x5c] sm:%s365] %v420
                  %v422 = vld [vmem:[%s372 + $0x60] sm:%s365]
                  %423 = vst [vmem:[%s373 + $0x60] sm:%s365] %v422
                  %v424 = vld [vmem:[%s372 + $0xc8] sm:%s365]
                  %425 = vst [vmem:[%s373 + $0x64] sm:%s365] %v424
                  %v426 = vld [vmem:[%s372 + $0xcc] sm:%s365]
                  %427 = vst [vmem:[%s373 + $0x68] sm:%s365] %v426
                  %v428 = vld [vmem:[%s372 + $0xd0] sm:%s365]
                  %429 = vst [vmem:[%s373 + $0x6c] sm:%s365] %v428
                  %v430 = vld [vmem:[%s372 + $0xd4] sm:%s365]
                  %431 = vst [vmem:[%s373 + $0x70] sm:%s365] %v430
                  %v432 = vld [vmem:[%s372 + $0xd8] sm:%s365]
                  %433 = vst [vmem:[%s373 + $0x74] sm:%s365] %v432
                  %v434 = vld [vmem:[%s372 + $0xdc] sm:%s365]
                  %435 = vst [vmem:[%s373 + $0x78] sm:%s365] %v434
                  %v436 = vld [vmem:[%s372 + $0xe0] sm:%s365]
                  %437 = vst [vmem:[%s373 + $0x7c] sm:%s365] %v436
                  %v438 = vld [vmem:[%s372 + $0xe4] sm:%s365]
                  %439 = vst [vmem:[%s373 + $0x80] sm:%s365] %v438
                  %v440 = vld [vmem:[%s372 + $0xe8] sm:%s365]
                  %441 = vst [vmem:[%s373 + $0x84] sm:%s365] %v440
                  %v442 = vld [vmem:[%s372 + $0xec] sm:%s365]
                  %443 = vst [vmem:[%s373 + $0x88] sm:%s365] %v442
                  %v444 = vld [vmem:[%s372 + $0xf0] sm:%s365]
                  %445 = vst [vmem:[%s373 + $0x8c] sm:%s365] %v444
                  %v446 = vld [vmem:[%s372 + $0xf4] sm:%s365]
                  %447 = vst [vmem:[%s373 + $0x90] sm:%s365] %v446
                  %v448 = vld [vmem:[%s372 + $0xf8] sm:%s365]
                  %449 = vst [vmem:[%s373 + $0x94] sm:%s365] %v448
                  %v450 = vld [vmem:[%s372 + $0xfc] sm:%s365]
                  %451 = vst [vmem:[%s373 + $0x98] sm:%s365] %v450
                  %v452 = vld [vmem:[%s372 + $0x100] sm:%s365]
                  %453 = vst [vmem:[%s373 + $0x9c] sm:%s365] %v452
                  %v454 = vld [vmem:[%s372 + $0x104] sm:%s365]
                  %455 = vst [vmem:[%s373 + $0xa0] sm:%s365] %v454
                  %v456 = vld [vmem:[%s372 + $0x108] sm:%s365]
                  %457 = vst [vmem:[%s373 + $0xa4] sm:%s365] %v456
                  %v458 = vld [vmem:[%s372 + $0x10c] sm:%s365]
                  %459 = vst [vmem:[%s373 + $0xa8] sm:%s365] %v458
                  %v460 = vld [vmem:[%s372 + $0x110] sm:%s365]
                  %461 = vst [vmem:[%s373 + $0xac] sm:%s365] %v460
                  %v462 = vld [vmem:[%s372 + $0x114] sm:%s365]
                  %463 = vst [vmem:[%s373 + $0xb0] sm:%s365] %v462
                  %v464 = vld [vmem:[%s372 + $0x118] sm:%s365]
                  %465 = vst [vmem:[%s373 + $0xb4] sm:%s365] %v464
                  %v466 = vld [vmem:[%s372 + $0x11c] sm:%s365]
                  %467 = vst [vmem:[%s373 + $0xb8] sm:%s365] %v466
                  %v468 = vld [vmem:[%s372 + $0x120] sm:%s365]
                  %469 = vst [vmem:[%s373 + $0xbc] sm:%s365] %v468
                  %v470 = vld [vmem:[%s372 + $0x124] sm:%s365]
                  %471 = vst [vmem:[%s373 + $0xc0] sm:%s365] %v470
                  %v472 = vld [vmem:[%s372 + $0x128] sm:%s365]
                  %473 = vst [vmem:[%s373 + $0xc4] sm:%s365] %v472
                  %v474 = vld [vmem:[%s372 + $0x190] sm:%s365]
                  %475 = vst [vmem:[%s373 + $0xc8] sm:%s365] %v474
                  %v476 = vld [vmem:[%s372 + $0x194] sm:%s365]
                  %477 = vst [vmem:[%s373 + $0xcc] sm:%s365] %v476
                  %v478 = vld [vmem:[%s372 + $0x198] sm:%s365]
                  %479 = vst [vmem:[%s373 + $0xd0] sm:%s365] %v478
                  %v480 = vld [vmem:[%s372 + $0x19c] sm:%s365]
                  %481 = vst [vmem:[%s373 + $0xd4] sm:%s365] %v480
                  %v482 = vld [vmem:[%s372 + $0x1a0] sm:%s365]
                  %483 = vst [vmem:[%s373 + $0xd8] sm:%s365] %v482
                  %v484 = vld [vmem:[%s372 + $0x1a4] sm:%s365]
                  %485 = vst [vmem:[%s373 + $0xdc] sm:%s365] %v484
                  %v486 = vld [vmem:[%s372 + $0x1a8] sm:%s365]
                  %487 = vst [vmem:[%s373 + $0xe0] sm:%s365] %v486
                  %v488 = vld [vmem:[%s372 + $0x1ac] sm:%s365]
                  %489 = vst [vmem:[%s373 + $0xe4] sm:%s365] %v488
                  %v490 = vld [vmem:[%s372 + $0x1b0] sm:%s365]
                  %491 = vst [vmem:[%s373 + $0xe8] sm:%s365] %v490
                  %v492 = vld [vmem:[%s372 + $0x1b4] sm:%s365]
                  %493 = vst [vmem:[%s373 + $0xec] sm:%s365] %v492
                  %v494 = vld [vmem:[%s372 + $0x1b8] sm:%s365]
                  %495 = vst [vmem:[%s373 + $0xf0] sm:%s365] %v494
                  %v496 = vld [vmem:[%s372 + $0x1bc] sm:%s365]
                  %497 = vst [vmem:[%s373 + $0xf4] sm:%s365] %v496
                  %v498 = vld [vmem:[%s372 + $0x1c0] sm:%s365]
                  %499 = vst [vmem:[%s373 + $0xf8] sm:%s365] %v498
                  %v500 = vld [vmem:[%s372 + $0x1c4] sm:%s365]
                  %501 = vst [vmem:[%s373 + $0xfc] sm:%s365] %v500
                  %v502 = vld [vmem:[%s372 + $0x1c8] sm:%s365]
                  %503 = vst [vmem:[%s373 + $0x100] sm:%s365] %v502
                  %v504 = vld [vmem:[%s372 + $0x1cc] sm:%s365]
                  %505 = vst [vmem:[%s373 + $0x104] sm:%s365] %v504
                  %v506 = vld [vmem:[%s372 + $0x1d0] sm:%s365]
                  %507 = vst [vmem:[%s373 + $0x108] sm:%s365] %v506
                  %v508 = vld [vmem:[%s372 + $0x1d4] sm:%s365]
                  %509 = vst [vmem:[%s373 + $0x10c] sm:%s365] %v508
                  %v510 = vld [vmem:[%s372 + $0x1d8] sm:%s365]
                  %511 = vst [vmem:[%s373 + $0x110] sm:%s365] %v510
                  %v512 = vld [vmem:[%s372 + $0x1dc] sm:%s365]
                  %513 = vst [vmem:[%s373 + $0x114] sm:%s365] %v512
                  %v514 = vld [vmem:[%s372 + $0x1e0] sm:%s365]
                  %515 = vst [vmem:[%s373 + $0x118] sm:%s365] %v514
                  %v516 = vld [vmem:[%s372 + $0x1e4] sm:%s365]
                  %517 = vst [vmem:[%s373 + $0x11c] sm:%s365] %v516
                  %v518 = vld [vmem:[%s372 + $0x1e8] sm:%s365]
                  %519 = vst [vmem:[%s373 + $0x120] sm:%s365] %v518
                  %v520 = vld [vmem:[%s372 + $0x1ec] sm:%s365]
                  %521 = vst [vmem:[%s373 + $0x124] sm:%s365] %v520
                  %v522 = vld [vmem:[%s372 + $0x1f0] sm:%s365]
                  %523 = vst [vmem:[%s373 + $0x128] sm:%s365] %v522
                  %v524 = vld [vmem:[%s372 + $0x258] sm:%s365]
                  %525 = vst [vmem:[%s373 + $0x12c] sm:%s365] %v524
                  %v526 = vld [vmem:[%s372 + $0x25c] sm:%s365]
                  %527 = vst [vmem:[%s373 + $0x130] sm:%s365] %v526
                  %v528 = vld [vmem:[%s372 + $0x260] sm:%s365]
                  %529 = vst [vmem:[%s373 + $0x134] sm:%s365] %v528
                  %v530 = vld [vmem:[%s372 + $0x264] sm:%s365]
                  %531 = vst [vmem:[%s373 + $0x138] sm:%s365] %v530
                  %v532 = vld [vmem:[%s372 + $0x268] sm:%s365]
                  %533 = vst [vmem:[%s373 + $0x13c] sm:%s365] %v532
                  %v534 = vld [vmem:[%s372 + $0x26c] sm:%s365]
                  %535 = vst [vmem:[%s373 + $0x140] sm:%s365] %v534
                  %v536 = vld [vmem:[%s372 + $0x270] sm:%s365]
                  %537 = vst [vmem:[%s373 + $0x144] sm:%s365] %v536
                  %v538 = vld [vmem:[%s372 + $0x274] sm:%s365]
                  %539 = vst [vmem:[%s373 + $0x148] sm:%s365] %v538
                  %v540 = vld [vmem:[%s372 + $0x278] sm:%s365]
                  %541 = vst [vmem:[%s373 + $0x14c] sm:%s365] %v540
                  %v542 = vld [vmem:[%s372 + $0x27c] sm:%s365]
                  %543 = vst [vmem:[%s373 + $0x150] sm:%s365] %v542
                  %v544 = vld [vmem:[%s372 + $0x280] sm:%s365]
                  %545 = vst [vmem:[%s373 + $0x154] sm:%s365] %v544
                  %v546 = vld [vmem:[%s372 + $0x284] sm:%s365]
                  %547 = vst [vmem:[%s373 + $0x158] sm:%s365] %v546
                  %v548 = vld [vmem:[%s372 + $0x288] sm:%s365]
                  %549 = vst [vmem:[%s373 + $0x15c] sm:%s365] %v548
                  %v550 = vld [vmem:[%s372 + $0x28c] sm:%s365]
                  %551 = vst [vmem:[%s373 + $0x160] sm:%s365] %v550
                  %v552 = vld [vmem:[%s372 + $0x290] sm:%s365]
                  %553 = vst [vmem:[%s373 + $0x164] sm:%s365] %v552
                  %v554 = vld [vmem:[%s372 + $0x294] sm:%s365]
                  %555 = vst [vmem:[%s373 + $0x168] sm:%s365] %v554
                  %v556 = vld [vmem:[%s372 + $0x298] sm:%s365]
                  %557 = vst [vmem:[%s373 + $0x16c] sm:%s365] %v556
                  %v558 = vld [vmem:[%s372 + $0x29c] sm:%s365]
                  %559 = vst [vmem:[%s373 + $0x170] sm:%s365] %v558
                  %v560 = vld [vmem:[%s372 + $0x2a0] sm:%s365]
                  %561 = vst [vmem:[%s373 + $0x174] sm:%s365] %v560
                  %v562 = vld [vmem:[%s372 + $0x2a4] sm:%s365]
                  %563 = vst [vmem:[%s373 + $0x178] sm:%s365] %v562
                  %v564 = vld [vmem:[%s372 + $0x2a8] sm:%s365]
                  %565 = vst [vmem:[%s373 + $0x17c] sm:%s365] %v564
                  %v566 = vld [vmem:[%s372 + $0x2ac] sm:%s365]
                  %567 = vst [vmem:[%s373 + $0x180] sm:%s365] %v566
                  %v568 = vld [vmem:[%s372 + $0x2b0] sm:%s365]
                  %569 = vst [vmem:[%s373 + $0x184] sm:%s365] %v568
                  %v570 = vld [vmem:[%s372 + $0x2b4] sm:%s365]
                  %571 = vst [vmem:[%s373 + $0x188] sm:%s365] %v570
                  %v572 = vld [vmem:[%s372 + $0x2b8] sm:%s365]
                  %573 = vst [vmem:[%s373 + $0x18c] sm:%s365] %v572
                $region63: #{lenet4_forward.3} parent=50 // loop_footer
                  %s371 = sadd.s32 1, %s367
                $region64: #{lenet4_forward.3} parent=50 // loop_footer_branch
                  %366 = sbr.rel target = $region60
                $region65: #{lenet4_forward.3} parent=50 // loop_exit
                  _
              $region51: #{lenet4_forward.3} parent=35 // pred_fallthru
                _
            $region36: #{lenet4_forward.3} parent=31 // pred_fallthru
              _
            // Predicated region
            $region37: #{lenet4_forward.3} parent=31 // pred_check
              _
            $region38: #{lenet4_forward.3} parent=31 // pred_check_branch
              %143 = sbr.rel (0) target = $region40
            $region39: #{lenet4_forward.3} parent=31 // pred_region
              %s145 = ssub.s32 16, 1
              loop: start=0, step=1, limit=1
              $region41: #{lenet4_forward.3} parent=39 // loop_pre_header
                _
              $region42: #{lenet4_forward.3} parent=39 // loop_header
                %s147 = sphi 0, %s151
                %p148 = scmp.ge.s32.totalorder %s147, 1
                %s152 = sphi %s137, %s137
                %s153 = sphi %s134, %s134
              $region43: #{lenet4_forward.3} parent=39 // loop_header_branch
                %150 = sbr.rel (%p148) target = $region47
              $region44: #{lenet4_forward.3} parent=39 // loop_body
                %v154 = vld [vmem:[%s152] sm:%s145]
                %155 = vst [vmem:[%s153] sm:%s145] %v154
                %v156 = vld [vmem:[%s152 + $0x4] sm:%s145]
                %157 = vst [vmem:[%s153 + $0x4] sm:%s145] %v156
                %v158 = vld [vmem:[%s152 + $0x8] sm:%s145]
                %159 = vst [vmem:[%s153 + $0x8] sm:%s145] %v158
                %v160 = vld [vmem:[%s152 + $0xc] sm:%s145]
                %161 = vst [vmem:[%s153 + $0xc] sm:%s145] %v160
                %v162 = vld [vmem:[%s152 + $0x10] sm:%s145]
                %163 = vst [vmem:[%s153 + $0x10] sm:%s145] %v162
                %v164 = vld [vmem:[%s152 + $0x14] sm:%s145]
                %165 = vst [vmem:[%s153 + $0x14] sm:%s145] %v164
                %v166 = vld [vmem:[%s152 + $0x18] sm:%s145]
                %167 = vst [vmem:[%s153 + $0x18] sm:%s145] %v166
                %v168 = vld [vmem:[%s152 + $0x1c] sm:%s145]
                %169 = vst [vmem:[%s153 + $0x1c] sm:%s145] %v168
                %v170 = vld [vmem:[%s152 + $0x20] sm:%s145]
                %171 = vst [vmem:[%s153 + $0x20] sm:%s145] %v170
                %v172 = vld [vmem:[%s152 + $0x24] sm:%s145]
                %173 = vst [vmem:[%s153 + $0x24] sm:%s145] %v172
                %v174 = vld [vmem:[%s152 + $0x28] sm:%s145]
                %175 = vst [vmem:[%s153 + $0x28] sm:%s145] %v174
                %v176 = vld [vmem:[%s152 + $0x2c] sm:%s145]
                %177 = vst [vmem:[%s153 + $0x2c] sm:%s145] %v176
                %v178 = vld [vmem:[%s152 + $0x30] sm:%s145]
                %179 = vst [vmem:[%s153 + $0x30] sm:%s145] %v178
                %v180 = vld [vmem:[%s152 + $0x34] sm:%s145]
                %181 = vst [vmem:[%s153 + $0x34] sm:%s145] %v180
                %v182 = vld [vmem:[%s152 + $0x38] sm:%s145]
                %183 = vst [vmem:[%s153 + $0x38] sm:%s145] %v182
                %v184 = vld [vmem:[%s152 + $0x3c] sm:%s145]
                %185 = vst [vmem:[%s153 + $0x3c] sm:%s145] %v184
                %v186 = vld [vmem:[%s152 + $0x40] sm:%s145]
                %187 = vst [vmem:[%s153 + $0x40] sm:%s145] %v186
                %v188 = vld [vmem:[%s152 + $0x44] sm:%s145]
                %189 = vst [vmem:[%s153 + $0x44] sm:%s145] %v188
                %v190 = vld [vmem:[%s152 + $0x48] sm:%s145]
                %191 = vst [vmem:[%s153 + $0x48] sm:%s145] %v190
                %v192 = vld [vmem:[%s152 + $0x4c] sm:%s145]
                %193 = vst [vmem:[%s153 + $0x4c] sm:%s145] %v192
                %v194 = vld [vmem:[%s152 + $0x50] sm:%s145]
                %195 = vst [vmem:[%s153 + $0x50] sm:%s145] %v194
                %v196 = vld [vmem:[%s152 + $0x54] sm:%s145]
                %197 = vst [vmem:[%s153 + $0x54] sm:%s145] %v196
                %v198 = vld [vmem:[%s152 + $0x58] sm:%s145]
                %199 = vst [vmem:[%s153 + $0x58] sm:%s145] %v198
                %v200 = vld [vmem:[%s152 + $0x5c] sm:%s145]
                %201 = vst [vmem:[%s153 + $0x5c] sm:%s145] %v200
                %v202 = vld [vmem:[%s152 + $0x60] sm:%s145]
                %203 = vst [vmem:[%s153 + $0x60] sm:%s145] %v202
                %v204 = vld [vmem:[%s152 + $0xc8] sm:%s145]
                %205 = vst [vmem:[%s153 + $0x64] sm:%s145] %v204
                %v206 = vld [vmem:[%s152 + $0xcc] sm:%s145]
                %207 = vst [vmem:[%s153 + $0x68] sm:%s145] %v206
                %v208 = vld [vmem:[%s152 + $0xd0] sm:%s145]
                %209 = vst [vmem:[%s153 + $0x6c] sm:%s145] %v208
                %v210 = vld [vmem:[%s152 + $0xd4] sm:%s145]
                %211 = vst [vmem:[%s153 + $0x70] sm:%s145] %v210
                %v212 = vld [vmem:[%s152 + $0xd8] sm:%s145]
                %213 = vst [vmem:[%s153 + $0x74] sm:%s145] %v212
                %v214 = vld [vmem:[%s152 + $0xdc] sm:%s145]
                %215 = vst [vmem:[%s153 + $0x78] sm:%s145] %v214
                %v216 = vld [vmem:[%s152 + $0xe0] sm:%s145]
                %217 = vst [vmem:[%s153 + $0x7c] sm:%s145] %v216
                %v218 = vld [vmem:[%s152 + $0xe4] sm:%s145]
                %219 = vst [vmem:[%s153 + $0x80] sm:%s145] %v218
                %v220 = vld [vmem:[%s152 + $0xe8] sm:%s145]
                %221 = vst [vmem:[%s153 + $0x84] sm:%s145] %v220
                %v222 = vld [vmem:[%s152 + $0xec] sm:%s145]
                %223 = vst [vmem:[%s153 + $0x88] sm:%s145] %v222
                %v224 = vld [vmem:[%s152 + $0xf0] sm:%s145]
                %225 = vst [vmem:[%s153 + $0x8c] sm:%s145] %v224
                %v226 = vld [vmem:[%s152 + $0xf4] sm:%s145]
                %227 = vst [vmem:[%s153 + $0x90] sm:%s145] %v226
                %v228 = vld [vmem:[%s152 + $0xf8] sm:%s145]
                %229 = vst [vmem:[%s153 + $0x94] sm:%s145] %v228
                %v230 = vld [vmem:[%s152 + $0xfc] sm:%s145]
                %231 = vst [vmem:[%s153 + $0x98] sm:%s145] %v230
                %v232 = vld [vmem:[%s152 + $0x100] sm:%s145]
                %233 = vst [vmem:[%s153 + $0x9c] sm:%s145] %v232
                %v234 = vld [vmem:[%s152 + $0x104] sm:%s145]
                %235 = vst [vmem:[%s153 + $0xa0] sm:%s145] %v234
                %v236 = vld [vmem:[%s152 + $0x108] sm:%s145]
                %237 = vst [vmem:[%s153 + $0xa4] sm:%s145] %v236
                %v238 = vld [vmem:[%s152 + $0x10c] sm:%s145]
                %239 = vst [vmem:[%s153 + $0xa8] sm:%s145] %v238
                %v240 = vld [vmem:[%s152 + $0x110] sm:%s145]
                %241 = vst [vmem:[%s153 + $0xac] sm:%s145] %v240
                %v242 = vld [vmem:[%s152 + $0x114] sm:%s145]
                %243 = vst [vmem:[%s153 + $0xb0] sm:%s145] %v242
                %v244 = vld [vmem:[%s152 + $0x118] sm:%s145]
                %245 = vst [vmem:[%s153 + $0xb4] sm:%s145] %v244
                %v246 = vld [vmem:[%s152 + $0x11c] sm:%s145]
                %247 = vst [vmem:[%s153 + $0xb8] sm:%s145] %v246
                %v248 = vld [vmem:[%s152 + $0x120] sm:%s145]
                %249 = vst [vmem:[%s153 + $0xbc] sm:%s145] %v248
                %v250 = vld [vmem:[%s152 + $0x124] sm:%s145]
                %251 = vst [vmem:[%s153 + $0xc0] sm:%s145] %v250
                %v252 = vld [vmem:[%s152 + $0x128] sm:%s145]
                %253 = vst [vmem:[%s153 + $0xc4] sm:%s145] %v252
                %v254 = vld [vmem:[%s152 + $0x190] sm:%s145]
                %255 = vst [vmem:[%s153 + $0xc8] sm:%s145] %v254
                %v256 = vld [vmem:[%s152 + $0x194] sm:%s145]
                %257 = vst [vmem:[%s153 + $0xcc] sm:%s145] %v256
                %v258 = vld [vmem:[%s152 + $0x198] sm:%s145]
                %259 = vst [vmem:[%s153 + $0xd0] sm:%s145] %v258
                %v260 = vld [vmem:[%s152 + $0x19c] sm:%s145]
                %261 = vst [vmem:[%s153 + $0xd4] sm:%s145] %v260
                %v262 = vld [vmem:[%s152 + $0x1a0] sm:%s145]
                %263 = vst [vmem:[%s153 + $0xd8] sm:%s145] %v262
                %v264 = vld [vmem:[%s152 + $0x1a4] sm:%s145]
                %265 = vst [vmem:[%s153 + $0xdc] sm:%s145] %v264
                %v266 = vld [vmem:[%s152 + $0x1a8] sm:%s145]
                %267 = vst [vmem:[%s153 + $0xe0] sm:%s145] %v266
                %v268 = vld [vmem:[%s152 + $0x1ac] sm:%s145]
                %269 = vst [vmem:[%s153 + $0xe4] sm:%s145] %v268
                %v270 = vld [vmem:[%s152 + $0x1b0] sm:%s145]
                %271 = vst [vmem:[%s153 + $0xe8] sm:%s145] %v270
                %v272 = vld [vmem:[%s152 + $0x1b4] sm:%s145]
                %273 = vst [vmem:[%s153 + $0xec] sm:%s145] %v272
                %v274 = vld [vmem:[%s152 + $0x1b8] sm:%s145]
                %275 = vst [vmem:[%s153 + $0xf0] sm:%s145] %v274
                %v276 = vld [vmem:[%s152 + $0x1bc] sm:%s145]
                %277 = vst [vmem:[%s153 + $0xf4] sm:%s145] %v276
                %v278 = vld [vmem:[%s152 + $0x1c0] sm:%s145]
                %279 = vst [vmem:[%s153 + $0xf8] sm:%s145] %v278
                %v280 = vld [vmem:[%s152 + $0x1c4] sm:%s145]
                %281 = vst [vmem:[%s153 + $0xfc] sm:%s145] %v280
                %v282 = vld [vmem:[%s152 + $0x1c8] sm:%s145]
                %283 = vst [vmem:[%s153 + $0x100] sm:%s145] %v282
                %v284 = vld [vmem:[%s152 + $0x1cc] sm:%s145]
                %285 = vst [vmem:[%s153 + $0x104] sm:%s145] %v284
                %v286 = vld [vmem:[%s152 + $0x1d0] sm:%s145]
                %287 = vst [vmem:[%s153 + $0x108] sm:%s145] %v286
                %v288 = vld [vmem:[%s152 + $0x1d4] sm:%s145]
                %289 = vst [vmem:[%s153 + $0x10c] sm:%s145] %v288
                %v290 = vld [vmem:[%s152 + $0x1d8] sm:%s145]
                %291 = vst [vmem:[%s153 + $0x110] sm:%s145] %v290
                %v292 = vld [vmem:[%s152 + $0x1dc] sm:%s145]
                %293 = vst [vmem:[%s153 + $0x114] sm:%s145] %v292
                %v294 = vld [vmem:[%s152 + $0x1e0] sm:%s145]
                %295 = vst [vmem:[%s153 + $0x118] sm:%s145] %v294
                %v296 = vld [vmem:[%s152 + $0x1e4] sm:%s145]
                %297 = vst [vmem:[%s153 + $0x11c] sm:%s145] %v296
                %v298 = vld [vmem:[%s152 + $0x1e8] sm:%s145]
                %299 = vst [vmem:[%s153 + $0x120] sm:%s145] %v298
                %v300 = vld [vmem:[%s152 + $0x1ec] sm:%s145]
                %301 = vst [vmem:[%s153 + $0x124] sm:%s145] %v300
                %v302 = vld [vmem:[%s152 + $0x1f0] sm:%s145]
                %303 = vst [vmem:[%s153 + $0x128] sm:%s145] %v302
                %v304 = vld [vmem:[%s152 + $0x258] sm:%s145]
                %305 = vst [vmem:[%s153 + $0x12c] sm:%s145] %v304
                %v306 = vld [vmem:[%s152 + $0x25c] sm:%s145]
                %307 = vst [vmem:[%s153 + $0x130] sm:%s145] %v306
                %v308 = vld [vmem:[%s152 + $0x260] sm:%s145]
                %309 = vst [vmem:[%s153 + $0x134] sm:%s145] %v308
                %v310 = vld [vmem:[%s152 + $0x264] sm:%s145]
                %311 = vst [vmem:[%s153 + $0x138] sm:%s145] %v310
                %v312 = vld [vmem:[%s152 + $0x268] sm:%s145]
                %313 = vst [vmem:[%s153 + $0x13c] sm:%s145] %v312
                %v314 = vld [vmem:[%s152 + $0x26c] sm:%s145]
                %315 = vst [vmem:[%s153 + $0x140] sm:%s145] %v314
                %v316 = vld [vmem:[%s152 + $0x270] sm:%s145]
                %317 = vst [vmem:[%s153 + $0x144] sm:%s145] %v316
                %v318 = vld [vmem:[%s152 + $0x274] sm:%s145]
                %319 = vst [vmem:[%s153 + $0x148] sm:%s145] %v318
                %v320 = vld [vmem:[%s152 + $0x278] sm:%s145]
                %321 = vst [vmem:[%s153 + $0x14c] sm:%s145] %v320
                %v322 = vld [vmem:[%s152 + $0x27c] sm:%s145]
                %323 = vst [vmem:[%s153 + $0x150] sm:%s145] %v322
                %v324 = vld [vmem:[%s152 + $0x280] sm:%s145]
                %325 = vst [vmem:[%s153 + $0x154] sm:%s145] %v324
                %v326 = vld [vmem:[%s152 + $0x284] sm:%s145]
                %327 = vst [vmem:[%s153 + $0x158] sm:%s145] %v326
                %v328 = vld [vmem:[%s152 + $0x288] sm:%s145]
                %329 = vst [vmem:[%s153 + $0x15c] sm:%s145] %v328
                %v330 = vld [vmem:[%s152 + $0x28c] sm:%s145]
                %331 = vst [vmem:[%s153 + $0x160] sm:%s145] %v330
                %v332 = vld [vmem:[%s152 + $0x290] sm:%s145]
                %333 = vst [vmem:[%s153 + $0x164] sm:%s145] %v332
                %v334 = vld [vmem:[%s152 + $0x294] sm:%s145]
                %335 = vst [vmem:[%s153 + $0x168] sm:%s145] %v334
                %v336 = vld [vmem:[%s152 + $0x298] sm:%s145]
                %337 = vst [vmem:[%s153 + $0x16c] sm:%s145] %v336
                %v338 = vld [vmem:[%s152 + $0x29c] sm:%s145]
                %339 = vst [vmem:[%s153 + $0x170] sm:%s145] %v338
                %v340 = vld [vmem:[%s152 + $0x2a0] sm:%s145]
                %341 = vst [vmem:[%s153 + $0x174] sm:%s145] %v340
                %v342 = vld [vmem:[%s152 + $0x2a4] sm:%s145]
                %343 = vst [vmem:[%s153 + $0x178] sm:%s145] %v342
                %v344 = vld [vmem:[%s152 + $0x2a8] sm:%s145]
                %345 = vst [vmem:[%s153 + $0x17c] sm:%s145] %v344
                %v346 = vld [vmem:[%s152 + $0x2ac] sm:%s145]
                %347 = vst [vmem:[%s153 + $0x180] sm:%s145] %v346
                %v348 = vld [vmem:[%s152 + $0x2b0] sm:%s145]
                %349 = vst [vmem:[%s153 + $0x184] sm:%s145] %v348
                %v350 = vld [vmem:[%s152 + $0x2b4] sm:%s145]
                %351 = vst [vmem:[%s153 + $0x188] sm:%s145] %v350
                %v352 = vld [vmem:[%s152 + $0x2b8] sm:%s145]
                %353 = vst [vmem:[%s153 + $0x18c] sm:%s145] %v352
              $region45: #{lenet4_forward.3} parent=39 // loop_footer
                %s151 = sadd.s32 1, %s147
              $region46: #{lenet4_forward.3} parent=39 // loop_footer_branch
                %146 = sbr.rel target = $region42
              $region47: #{lenet4_forward.3} parent=39 // loop_exit
                _
            $region40: #{lenet4_forward.3} parent=31 // pred_fallthru
              _
          $region32: #{lenet4_forward.3} parent=27 // pred_fallthru
            _
          %574 = vnop
        $region28: #{lenet4_forward.3} parent=23 // pred_fallthru
          _
      $region24: #{lenet4_forward.3} parent=5 // pred_fallthru
        _
      %p575 = scmp.le.s32.totalorder 1, %s9
      %p576 = scmp.lt.s32.totalorder %s9, 3
      %p577 = pnand %p575, %p576
      %p578 = pneg %p577
      // Predicated region
      $region66: #{lenet4_forward.3} parent=5 // pred_check
        _
      $region67: #{lenet4_forward.3} parent=5 // pred_check_branch
        %580 = sbr.rel (%p577) target = $region69
      $region68: #{lenet4_forward.3} parent=5 // pred_region
        %s581 = ssub.s32 %s9, 1
        %s582 = sand.u32 %s22, 1
        %s583 = sand.u32 %s22, 1
        %s584 = smul.addr %s583, 400
        %s585 = scalar_lea.vmem [#allocation2], %s584
        // Predicated region
        $region70: #{lenet4_forward.3} parent=68 // pred_check
          %p586 = pneg %p35
        $region71: #{lenet4_forward.3} parent=68 // pred_check_branch
          %588 = sbr.rel (%p586) target = $region73
        $region72: #{lenet4_forward.3} parent=68 // pred_region
          _
        $region73: #{lenet4_forward.3} parent=68 // pred_fallthru
          _
        %s589 = sand.u32 %s22, 1
        %s590 = sand.u32 %s22, 1
        %s591 = smul.addr %s590, 400
        %s592 = scalar_lea.vmem [#allocation2], %s591
        %p593 = pneg %p35
        %p594 = pneg %p32
        %p595 = pneg %p56
        %p596 = pneg %p53
        %p597 = pneg %p77
        %p598 = pneg %p74
        %p599 = pneg %p103
        %p600 = pneg %p100
        %s601 = smul.u32 25, %s14
        %p602 = scmp.lt.s32.totalorder %s601, 49
        %s603 = scalar_select %p602, %s601, 49
        %s604 = smul.addr %s603, 4
        %s605 = scalar_lea.vmem %s3, %s604
        %s606 = smul.u32 25, %s14
        %s607 = smul.u32 25, %s14
        %p608 = scmp.lt.s32.totalorder %s607, 49
        %s609 = scalar_select %p608, %s607, 49
        %s610 = smul.addr %s609, 4
        %s611 = scalar_lea.vmem %s3, %s610
        %s612 = smul.u32 25, %s14
        %v613 = vld [vmem:[%s585] sm:$0xf]
        %v614 = vld [vmem:[%s585 + $0x4] sm:$0xf]
        %v615 = vld [vmem:[%s585 + $0x8] sm:$0xf]
        %v616 = vld [vmem:[%s585 + $0xc] sm:$0xf]
        %v617 = vld [vmem:[%s585 + $0x10] sm:$0xf]
        %v618 = vld [vmem:[%s585 + $0x14] sm:$0xf]
        %v619 = vld [vmem:[%s585 + $0x18] sm:$0xf]
        %v620 = vld [vmem:[%s585 + $0x1c] sm:$0xf]
        %v621 = vld [vmem:[%s585 + $0x20] sm:$0xf]
        %v622 = vld [vmem:[%s585 + $0x24] sm:$0xf]
        %v623 = vld [vmem:[%s585 + $0x28] sm:$0xf]
        %v624 = vld [vmem:[%s585 + $0x2c] sm:$0xf]
        %v625 = vld [vmem:[%s585 + $0x30] sm:$0xf]
        %v626 = vld [vmem:[%s585 + $0x34] sm:$0xf]
        %v627 = vld [vmem:[%s585 + $0x38] sm:$0xf]
        %v628 = vld [vmem:[%s585 + $0x3c] sm:$0xf]
        %v629 = vld [vmem:[%s585 + $0x40] sm:$0xf]
        %v630 = vld [vmem:[%s585 + $0x44] sm:$0xf]
        %v631 = vld [vmem:[%s585 + $0x48] sm:$0xf]
        %v632 = vld [vmem:[%s585 + $0x4c] sm:$0xf]
        %v633 = vld [vmem:[%s585 + $0x50] sm:$0xf]
        %v634 = vld [vmem:[%s585 + $0x54] sm:$0xf]
        %v635 = vld [vmem:[%s585 + $0x58] sm:$0xf]
        %v636 = vld [vmem:[%s585 + $0x5c] sm:$0xf]
        %v637 = vld [vmem:[%s585 + $0x60] sm:$0xf]
        %v638 = vld [vmem:[%s585 + $0x64] sm:$0xf]
        %v639 = vld [vmem:[%s585 + $0x68] sm:$0xf]
        %v640 = vld [vmem:[%s585 + $0x6c] sm:$0xf]
        %v641 = vld [vmem:[%s585 + $0x70] sm:$0xf]
        %v642 = vld [vmem:[%s585 + $0x74] sm:$0xf]
        %v643 = vld [vmem:[%s585 + $0x78] sm:$0xf]
        %v644 = vld [vmem:[%s585 + $0x7c] sm:$0xf]
        %v645 = vld [vmem:[%s585 + $0x80] sm:$0xf]
        %v646 = vld [vmem:[%s585 + $0x84] sm:$0xf]
        %v647 = vld [vmem:[%s585 + $0x88] sm:$0xf]
        %v648 = vld [vmem:[%s585 + $0x8c] sm:$0xf]
        %v649 = vld [vmem:[%s585 + $0x90] sm:$0xf]
        %v650 = vld [vmem:[%s585 + $0x94] sm:$0xf]
        %v651 = vld [vmem:[%s585 + $0x98] sm:$0xf]
        %v652 = vld [vmem:[%s585 + $0x9c] sm:$0xf]
        %v653 = vld [vmem:[%s585 + $0xa0] sm:$0xf]
        %v654 = vld [vmem:[%s585 + $0xa4] sm:$0xf]
        %v655 = vld [vmem:[%s585 + $0xa8] sm:$0xf]
        %v656 = vld [vmem:[%s585 + $0xac] sm:$0xf]
        %v657 = vld [vmem:[%s585 + $0xb0] sm:$0xf]
        %v658 = vld [vmem:[%s585 + $0xb4] sm:$0xf]
        %v659 = vld [vmem:[%s585 + $0xb8] sm:$0xf]
        %v660 = vld [vmem:[%s585 + $0xbc] sm:$0xf]
        %v661 = vld [vmem:[%s585 + $0xc0] sm:$0xf]
        %v662 = vld [vmem:[%s585 + $0xc4] sm:$0xf]
        %v663 = vld [vmem:[%s585 + $0xc8] sm:$0xf]
        %v664 = vld [vmem:[%s585 + $0xcc] sm:$0xf]
        %v665 = vld [vmem:[%s585 + $0xd0] sm:$0xf]
        %v666 = vld [vmem:[%s585 + $0xd4] sm:$0xf]
        %v667 = vld [vmem:[%s585 + $0xd8] sm:$0xf]
        %v668 = vld [vmem:[%s585 + $0xdc] sm:$0xf]
        %v669 = vld [vmem:[%s585 + $0xe0] sm:$0xf]
        %v670 = vld [vmem:[%s585 + $0xe4] sm:$0xf]
        %v671 = vld [vmem:[%s585 + $0xe8] sm:$0xf]
        %v672 = vld [vmem:[%s585 + $0xec] sm:$0xf]
        %v673 = vld [vmem:[%s585 + $0xf0] sm:$0xf]
        %v674 = vld [vmem:[%s585 + $0xf4] sm:$0xf]
        %v675 = vld [vmem:[%s585 + $0xf8] sm:$0xf]
        %v676 = vld [vmem:[%s585 + $0xfc] sm:$0xf]
        %v677 = vld [vmem:[%s585 + $0x100] sm:$0xf]
        %v678 = vld [vmem:[%s585 + $0x104] sm:$0xf]
        %v679 = vld [vmem:[%s585 + $0x108] sm:$0xf]
        %v680 = vld [vmem:[%s585 + $0x10c] sm:$0xf]
        %v681 = vld [vmem:[%s585 + $0x110] sm:$0xf]
        %v682 = vld [vmem:[%s585 + $0x114] sm:$0xf]
        %v683 = vld [vmem:[%s585 + $0x118] sm:$0xf]
        %v684 = vld [vmem:[%s585 + $0x11c] sm:$0xf]
        %v685 = vld [vmem:[%s585 + $0x120] sm:$0xf]
        %v686 = vld [vmem:[%s585 + $0x124] sm:$0xf]
        %v687 = vld [vmem:[%s585 + $0x128] sm:$0xf]
        %v688 = vld [vmem:[%s585 + $0x12c] sm:$0xf]
        %v689 = vld [vmem:[%s585 + $0x130] sm:$0xf]
        %v690 = vld [vmem:[%s585 + $0x134] sm:$0xf]
        %v691 = vld [vmem:[%s585 + $0x138] sm:$0xf]
        %v692 = vld [vmem:[%s585 + $0x13c] sm:$0xf]
        %v693 = vld [vmem:[%s585 + $0x140] sm:$0xf]
        %v694 = vld [vmem:[%s585 + $0x144] sm:$0xf]
        %v695 = vld [vmem:[%s585 + $0x148] sm:$0xf]
        %v696 = vld [vmem:[%s585 + $0x14c] sm:$0xf]
        %v697 = vld [vmem:[%s585 + $0x150] sm:$0xf]
        %v698 = vld [vmem:[%s585 + $0x154] sm:$0xf]
        %v699 = vld [vmem:[%s585 + $0x158] sm:$0xf]
        %v700 = vld [vmem:[%s585 + $0x15c] sm:$0xf]
        %v701 = vld [vmem:[%s585 + $0x160] sm:$0xf]
        %v702 = vld [vmem:[%s585 + $0x164] sm:$0xf]
        %v703 = vld [vmem:[%s585 + $0x168] sm:$0xf]
        %v704 = vld [vmem:[%s585 + $0x16c] sm:$0xf]
        %v705 = vld [vmem:[%s585 + $0x170] sm:$0xf]
        %v706 = vld [vmem:[%s585 + $0x174] sm:$0xf]
        %v707 = vld [vmem:[%s585 + $0x178] sm:$0xf]
        %v708 = vld [vmem:[%s585 + $0x17c] sm:$0xf]
        %v709 = vld [vmem:[%s585 + $0x180] sm:$0xf]
        %v710 = vld [vmem:[%s585 + $0x184] sm:$0xf]
        %v711 = vld [vmem:[%s585 + $0x188] sm:$0xf]
        %v712 = vld [vmem:[%s585 + $0x18c] sm:$0xf]
        %v713 = vld [vmem:[%s1] sm:$0xf]
        %v714 = vld [vmem:[%s1 + $0x4] sm:$0xf]
        %v715 = vld [vmem:[%s1 + $0x8] sm:$0xf]
        %v716 = vld [vmem:[%s1 + $0xc] sm:$0xf]
        %v717 = vld [vmem:[%s1 + $0x10] sm:$0xf]
        %v718 = vld [vmem:[%s1 + $0x14] sm:$0xf]
        %v719 = vld [vmem:[%s1 + $0x18] sm:$0xf]
        %v720 = vld [vmem:[%s1 + $0x1c] sm:$0xf]
        %v721 = vld [vmem:[%s1 + $0x20] sm:$0xf]
        %v722 = vld [vmem:[%s1 + $0x24] sm:$0xf]
        %v723 = vld [vmem:[%s1 + $0x28] sm:$0xf]
        %v724 = vld [vmem:[%s1 + $0x2c] sm:$0xf]
        %v725 = vld [vmem:[%s1 + $0x30] sm:$0xf]
        %v726 = vld [vmem:[%s1 + $0x34] sm:$0xf]
        %v727 = vld [vmem:[%s1 + $0x38] sm:$0xf]
        %v728 = vld [vmem:[%s1 + $0x3c] sm:$0xf]
        %v829 = vunpack.c.l.b16 %v613
        %v830 = vunpack.c.l.b16 %v614
        %v831 = vunpack.c.l.b16 %v615
        %v832 = vunpack.c.l.b16 %v616
        %v833 = vunpack.c.l.b16 %v617
        %v834 = vunpack.c.l.b16 %v618
        %v835 = vunpack.c.l.b16 %v619
        %v836 = vunpack.c.l.b16 %v620
        %v837 = vunpack.c.l.b16 %v621
        %v838 = vunpack.c.l.b16 %v622
        %v839 = vunpack.c.l.b16 %v623
        %v840 = vunpack.c.l.b16 %v624
        %v841 = vunpack.c.l.b16 %v625
        %v842 = vunpack.c.l.b16 %v626
        %v843 = vunpack.c.l.b16 %v627
        %v844 = vunpack.c.l.b16 %v628
        %v845 = vunpack.c.l.b16 %v629
        %v846 = vunpack.c.l.b16 %v630
        %v847 = vunpack.c.l.b16 %v631
        %v848 = vunpack.c.l.b16 %v632
        %v849 = vunpack.c.l.b16 %v633
        %v850 = vunpack.c.l.b16 %v634
        %v851 = vunpack.c.l.b16 %v635
        %v852 = vunpack.c.l.b16 %v636
        %v853 = vunpack.c.l.b16 %v637
        %v854 = vunpack.c.l.b16 %v638
        %v855 = vunpack.c.l.b16 %v639
        %v856 = vunpack.c.l.b16 %v640
        %v857 = vunpack.c.l.b16 %v641
        %v858 = vunpack.c.l.b16 %v642
        %v859 = vunpack.c.l.b16 %v643
        %v860 = vunpack.c.l.b16 %v644
        %v861 = vunpack.c.l.b16 %v645
        %v862 = vunpack.c.l.b16 %v646
        %v863 = vunpack.c.l.b16 %v647
        %v864 = vunpack.c.l.b16 %v648
        %v865 = vunpack.c.l.b16 %v649
        %v866 = vunpack.c.l.b16 %v650
        %v867 = vunpack.c.l.b16 %v651
        %v868 = vunpack.c.l.b16 %v652
        %v869 = vunpack.c.l.b16 %v653
        %v870 = vunpack.c.l.b16 %v654
        %v871 = vunpack.c.l.b16 %v655
        %v872 = vunpack.c.l.b16 %v656
        %v873 = vunpack.c.l.b16 %v657
        %v874 = vunpack.c.l.b16 %v658
        %v875 = vunpack.c.l.b16 %v659
        %v876 = vunpack.c.l.b16 %v660
        %v877 = vunpack.c.l.b16 %v661
        %v878 = vunpack.c.l.b16 %v662
        %v879 = vunpack.c.l.b16 %v663
        %v880 = vunpack.c.l.b16 %v664
        %v881 = vunpack.c.l.b16 %v665
        %v882 = vunpack.c.l.b16 %v666
        %v883 = vunpack.c.l.b16 %v667
        %v884 = vunpack.c.l.b16 %v668
        %v885 = vunpack.c.l.b16 %v669
        %v886 = vunpack.c.l.b16 %v670
        %v887 = vunpack.c.l.b16 %v671
        %v888 = vunpack.c.l.b16 %v672
        %v889 = vunpack.c.l.b16 %v673
        %v890 = vunpack.c.l.b16 %v674
        %v891 = vunpack.c.l.b16 %v675
        %v892 = vunpack.c.l.b16 %v676
        %v893 = vunpack.c.l.b16 %v677
        %v894 = vunpack.c.l.b16 %v678
        %v895 = vunpack.c.l.b16 %v679
        %v896 = vunpack.c.l.b16 %v680
        %v897 = vunpack.c.l.b16 %v681
        %v898 = vunpack.c.l.b16 %v682
        %v899 = vunpack.c.l.b16 %v683
        %v900 = vunpack.c.l.b16 %v684
        %v901 = vunpack.c.l.b16 %v685
        %v902 = vunpack.c.l.b16 %v686
        %v903 = vunpack.c.l.b16 %v687
        %v904 = vunpack.c.l.b16 %v688
        %v905 = vunpack.c.l.b16 %v689
        %v906 = vunpack.c.l.b16 %v690
        %v907 = vunpack.c.l.b16 %v691
        %v908 = vunpack.c.l.b16 %v692
        %v909 = vunpack.c.l.b16 %v693
        %v910 = vunpack.c.l.b16 %v694
        %v911 = vunpack.c.l.b16 %v695
        %v912 = vunpack.c.l.b16 %v696
        %v913 = vunpack.c.l.b16 %v697
        %v914 = vunpack.c.l.b16 %v698
        %v915 = vunpack.c.l.b16 %v699
        %v916 = vunpack.c.l.b16 %v700
        %v917 = vunpack.c.l.b16 %v701
        %v918 = vunpack.c.l.b16 %v702
        %v919 = vunpack.c.l.b16 %v703
        %v920 = vunpack.c.l.b16 %v704
        %v921 = vunpack.c.l.b16 %v705
        %v922 = vunpack.c.l.b16 %v706
        %v923 = vunpack.c.l.b16 %v707
        %v924 = vunpack.c.l.b16 %v708
        %v925 = vunpack.c.l.b16 %v709
        %v926 = vunpack.c.l.b16 %v710
        %v927 = vunpack.c.l.b16 %v711
        %v928 = vunpack.c.l.b16 %v712
        %v929 = vpack.c.b16 %v830, %v829
        %v930 = vpack.c.b16 %v832, %v831
        %v931 = vpack.c.b16 %v834, %v833
        %v932 = vpack.c.b16 %v836, %v835
        %v933 = vpack.c.b16 %v838, %v837
        %v934 = vpack.c.b16 %v840, %v839
        %v935 = vpack.c.b16 %v842, %v841
        %v936 = vpack.c.b16 %v844, %v843
        %v937 = vpack.c.b16 %v846, %v845
        %v938 = vpack.c.b16 %v848, %v847
        %v939 = vpack.c.b16 %v850, %v849
        %v940 = vpack.c.b16 %v852, %v851
        %v941 = vpack.c.b16 %v854, %v853
        %v942 = vpack.c.b16 %v856, %v855
        %v943 = vpack.c.b16 %v858, %v857
        %v944 = vpack.c.b16 %v860, %v859
        %v945 = vpack.c.b16 %v862, %v861
        %v946 = vpack.c.b16 %v864, %v863
        %v947 = vpack.c.b16 %v866, %v865
        %v948 = vpack.c.b16 %v868, %v867
        %v949 = vpack.c.b16 %v870, %v869
        %v950 = vpack.c.b16 %v872, %v871
        %v951 = vpack.c.b16 %v874, %v873
        %v952 = vpack.c.b16 %v876, %v875
        %v953 = vpack.c.b16 %v878, %v877
        %v954 = vpack.c.b16 %v880, %v879
        %v955 = vpack.c.b16 %v882, %v881
        %v956 = vpack.c.b16 %v884, %v883
        %v957 = vpack.c.b16 %v886, %v885
        %v958 = vpack.c.b16 %v888, %v887
        %v959 = vpack.c.b16 %v890, %v889
        %v960 = vpack.c.b16 %v892, %v891
        %v961 = vpack.c.b16 %v894, %v893
        %v962 = vpack.c.b16 %v896, %v895
        %v963 = vpack.c.b16 %v898, %v897
        %v964 = vpack.c.b16 %v900, %v899
        %v965 = vpack.c.b16 %v902, %v901
        %v966 = vpack.c.b16 %v904, %v903
        %v967 = vpack.c.b16 %v906, %v905
        %v968 = vpack.c.b16 %v908, %v907
        %v969 = vpack.c.b16 %v910, %v909
        %v970 = vpack.c.b16 %v912, %v911
        %v971 = vpack.c.b16 %v914, %v913
        %v972 = vpack.c.b16 %v916, %v915
        %v973 = vpack.c.b16 %v918, %v917
        %v974 = vpack.c.b16 %v920, %v919
        %v975 = vpack.c.b16 %v922, %v921
        %v976 = vpack.c.b16 %v924, %v923
        %v977 = vpack.c.b16 %v926, %v925
        %v978 = vpack.c.b16 %v928, %v927
        %v1045 = vunpack.c.l.b16 %v713
        %v1046 = vunpack.c.l.b16 %v714
        %v1047 = vunpack.c.l.b16 %v715
        %v1048 = vunpack.c.l.b16 %v716
        %v1049 = vunpack.c.l.b16 %v717
        %v1050 = vunpack.c.l.b16 %v718
        %v1051 = vunpack.c.l.b16 %v719
        %v1052 = vunpack.c.l.b16 %v720
        %v1053 = vunpack.c.l.b16 %v721
        %v1054 = vunpack.c.l.b16 %v722
        %v1055 = vunpack.c.l.b16 %v723
        %v1056 = vunpack.c.l.b16 %v724
        %v1057 = vunpack.c.l.b16 %v725
        %v1058 = vunpack.c.l.b16 %v726
        %v1059 = vunpack.c.l.b16 %v727
        %v1060 = vunpack.c.l.b16 %v728
        %v1061 = vpack.c.b16 %v1046, %v1045
        %v1062 = vpack.c.b16 %v1048, %v1047
        %v1063 = vpack.c.b16 %v1050, %v1049
        %v1064 = vpack.c.b16 %v1052, %v1051
        %v1065 = vpack.c.b16 %v1054, %v1053
        %v1066 = vpack.c.b16 %v1056, %v1055
        %v1067 = vpack.c.b16 %v1058, %v1057
        %v1068 = vpack.c.b16 %v1060, %v1059
        %1077 = vmatpush.bf16.msra.mxu0 %v1068
        %1078 = vmatpush.bf16.msra.mxu0 %v1067
        %1079 = vmatpush.bf16.msra.mxu0 %v1066
        %1080 = vmatpush.bf16.msra.mxu0 %v1065
        %1081 = vmatpush.bf16.msra.mxu0 %v1064
        %1082 = vmatpush.bf16.msra.mxu0 %v1063
        %1083 = vmatpush.bf16.msra.mxu0 %v1062
        %1084 = vmatpush.bf16.msra.mxu0 %v1061
        %1085 = vmatmul.bf16.gmra.mxu0 %v929
        %v1086 = vpop.f32.mrf.mxu0
        %v1087 = vadd.f32 0.0, %v1086
        %v1088 = vpop.f32.mrf.mxu0
        %v1089 = vadd.f32 0.0, %v1088
        %1090 = vmatmul.bf16.gmra.mxu0 %v930
        %v1091 = vpop.f32.mrf.mxu0
        %v1092 = vadd.f32 0.0, %v1091
        %v1093 = vpop.f32.mrf.mxu0
        %v1094 = vadd.f32 0.0, %v1093
        %1095 = vmatmul.bf16.gmra.mxu0 %v931
        %v1096 = vpop.f32.mrf.mxu0
        %v1097 = vadd.f32 0.0, %v1096
        %v1098 = vpop.f32.mrf.mxu0
        %v1099 = vadd.f32 0.0, %v1098
        %1100 = vmatmul.bf16.gmra.mxu0 %v932
        %v1101 = vpop.f32.mrf.mxu0
        %v1102 = vadd.f32 0.0, %v1101
        %v1103 = vpop.f32.mrf.mxu0
        %v1104 = vadd.f32 0.0, %v1103
        %1105 = vmatmul.bf16.gmra.mxu0 %v933
        %v1106 = vpop.f32.mrf.mxu0
        %v1107 = vadd.f32 0.0, %v1106
        %v1108 = vpop.f32.mrf.mxu0
        %v1109 = vadd.f32 0.0, %v1108
        %1110 = vmatmul.bf16.gmra.mxu0 %v934
        %v1111 = vpop.f32.mrf.mxu0
        %v1112 = vadd.f32 0.0, %v1111
        %v1113 = vpop.f32.mrf.mxu0
        %v1114 = vadd.f32 0.0, %v1113
        %1115 = vmatmul.bf16.gmra.mxu0 %v935
        %v1116 = vpop.f32.mrf.mxu0
        %v1117 = vadd.f32 0.0, %v1116
        %v1118 = vpop.f32.mrf.mxu0
        %v1119 = vadd.f32 0.0, %v1118
        %1120 = vmatmul.bf16.gmra.mxu0 %v936
        %v1121 = vpop.f32.mrf.mxu0
        %v1122 = vadd.f32 0.0, %v1121
        %v1123 = vpop.f32.mrf.mxu0
        %v1124 = vadd.f32 0.0, %v1123
        %1125 = vmatmul.bf16.gmra.mxu0 %v937
        %v1126 = vpop.f32.mrf.mxu0
        %v1127 = vadd.f32 0.0, %v1126
        %v1128 = vpop.f32.mrf.mxu0
        %v1129 = vadd.f32 0.0, %v1128
        %1130 = vmatmul.bf16.gmra.mxu0 %v938
        %v1131 = vpop.f32.mrf.mxu0
        %v1132 = vadd.f32 0.0, %v1131
        %v1133 = vpop.f32.mrf.mxu0
        %v1134 = vadd.f32 0.0, %v1133
        %1135 = vmatmul.bf16.gmra.mxu0 %v939
        %v1136 = vpop.f32.mrf.mxu0
        %v1137 = vadd.f32 0.0, %v1136
        %v1138 = vpop.f32.mrf.mxu0
        %v1139 = vadd.f32 0.0, %v1138
        %1140 = vmatmul.bf16.gmra.mxu0 %v940
        %v1141 = vpop.f32.mrf.mxu0
        %v1142 = vadd.f32 0.0, %v1141
        %v1143 = vpop.f32.mrf.mxu0
        %v1144 = vadd.f32 0.0, %v1143
        %1145 = vmatmul.bf16.gmra.mxu0 %v941
        %v1146 = vpop.f32.mrf.mxu0
        %v1147 = vadd.f32 0.0, %v1146
        %v1148 = vpop.f32.mrf.mxu0
        %v1149 = vadd.f32 0.0, %v1148
        %1150 = vmatmul.bf16.gmra.mxu0 %v942
        %v1151 = vpop.f32.mrf.mxu0
        %v1152 = vadd.f32 0.0, %v1151
        %v1153 = vpop.f32.mrf.mxu0
        %v1154 = vadd.f32 0.0, %v1153
        %1155 = vmatmul.bf16.gmra.mxu0 %v943
        %v1156 = vpop.f32.mrf.mxu0
        %v1157 = vadd.f32 0.0, %v1156
        %v1158 = vpop.f32.mrf.mxu0
        %v1159 = vadd.f32 0.0, %v1158
        %1160 = vmatmul.bf16.gmra.mxu0 %v944
        %v1161 = vpop.f32.mrf.mxu0
        %v1162 = vadd.f32 0.0, %v1161
        %v1163 = vpop.f32.mrf.mxu0
        %v1164 = vadd.f32 0.0, %v1163
        %1165 = vmatmul.bf16.gmra.mxu0 %v945
        %v1166 = vpop.f32.mrf.mxu0
        %v1167 = vadd.f32 0.0, %v1166
        %v1168 = vpop.f32.mrf.mxu0
        %v1169 = vadd.f32 0.0, %v1168
        %1170 = vmatmul.bf16.gmra.mxu0 %v946
        %v1171 = vpop.f32.mrf.mxu0
        %v1172 = vadd.f32 0.0, %v1171
        %v1173 = vpop.f32.mrf.mxu0
        %v1174 = vadd.f32 0.0, %v1173
        %1175 = vmatmul.bf16.gmra.mxu0 %v947
        %v1176 = vpop.f32.mrf.mxu0
        %v1177 = vadd.f32 0.0, %v1176
        %v1178 = vpop.f32.mrf.mxu0
        %v1179 = vadd.f32 0.0, %v1178
        %1180 = vmatmul.bf16.gmra.mxu0 %v948
        %v1181 = vpop.f32.mrf.mxu0
        %v1182 = vadd.f32 0.0, %v1181
        %v1183 = vpop.f32.mrf.mxu0
        %v1184 = vadd.f32 0.0, %v1183
        %1185 = vmatmul.bf16.gmra.mxu0 %v949
        %v1186 = vpop.f32.mrf.mxu0
        %v1187 = vadd.f32 0.0, %v1186
        %v1188 = vpop.f32.mrf.mxu0
        %v1189 = vadd.f32 0.0, %v1188
        %1190 = vmatmul.bf16.gmra.mxu0 %v950
        %v1191 = vpop.f32.mrf.mxu0
        %v1192 = vadd.f32 0.0, %v1191
        %v1193 = vpop.f32.mrf.mxu0
        %v1194 = vadd.f32 0.0, %v1193
        %1195 = vmatmul.bf16.gmra.mxu0 %v951
        %v1196 = vpop.f32.mrf.mxu0
        %v1197 = vadd.f32 0.0, %v1196
        %v1198 = vpop.f32.mrf.mxu0
        %v1199 = vadd.f32 0.0, %v1198
        %1200 = vmatmul.bf16.gmra.mxu0 %v952
        %v1201 = vpop.f32.mrf.mxu0
        %v1202 = vadd.f32 0.0, %v1201
        %v1203 = vpop.f32.mrf.mxu0
        %v1204 = vadd.f32 0.0, %v1203
        %1205 = vmatmul.bf16.gmra.mxu0 %v953
        %v1206 = vpop.f32.mrf.mxu0
        %v1207 = vadd.f32 0.0, %v1206
        %v1208 = vpop.f32.mrf.mxu0
        %v1209 = vadd.f32 0.0, %v1208
        %1210 = vmatmul.bf16.gmra.mxu0 %v954
        %v1211 = vpop.f32.mrf.mxu0
        %v1212 = vadd.f32 0.0, %v1211
        %v1213 = vpop.f32.mrf.mxu0
        %v1214 = vadd.f32 0.0, %v1213
        %1215 = vmatmul.bf16.gmra.mxu0 %v955
        %v1216 = vpop.f32.mrf.mxu0
        %v1217 = vadd.f32 0.0, %v1216
        %v1218 = vpop.f32.mrf.mxu0
        %v1219 = vadd.f32 0.0, %v1218
        %1220 = vmatmul.bf16.gmra.mxu0 %v956
        %v1221 = vpop.f32.mrf.mxu0
        %v1222 = vadd.f32 0.0, %v1221
        %v1223 = vpop.f32.mrf.mxu0
        %v1224 = vadd.f32 0.0, %v1223
        %1225 = vmatmul.bf16.gmra.mxu0 %v957
        %v1226 = vpop.f32.mrf.mxu0
        %v1227 = vadd.f32 0.0, %v1226
        %v1228 = vpop.f32.mrf.mxu0
        %v1229 = vadd.f32 0.0, %v1228
        %1230 = vmatmul.bf16.gmra.mxu0 %v958
        %v1231 = vpop.f32.mrf.mxu0
        %v1232 = vadd.f32 0.0, %v1231
        %v1233 = vpop.f32.mrf.mxu0
        %v1234 = vadd.f32 0.0, %v1233
        %1235 = vmatmul.bf16.gmra.mxu0 %v959
        %v1236 = vpop.f32.mrf.mxu0
        %v1237 = vadd.f32 0.0, %v1236
        %v1238 = vpop.f32.mrf.mxu0
        %v1239 = vadd.f32 0.0, %v1238
        %1240 = vmatmul.bf16.gmra.mxu0 %v960
        %v1241 = vpop.f32.mrf.mxu0
        %v1242 = vadd.f32 0.0, %v1241
        %v1243 = vpop.f32.mrf.mxu0
        %v1244 = vadd.f32 0.0, %v1243
        %1245 = vmatmul.bf16.gmra.mxu0 %v961
        %v1246 = vpop.f32.mrf.mxu0
        %v1247 = vadd.f32 0.0, %v1246
        %v1248 = vpop.f32.mrf.mxu0
        %v1249 = vadd.f32 0.0, %v1248
        %1250 = vmatmul.bf16.gmra.mxu0 %v962
        %v1251 = vpop.f32.mrf.mxu0
        %v1252 = vadd.f32 0.0, %v1251
        %v1253 = vpop.f32.mrf.mxu0
        %v1254 = vadd.f32 0.0, %v1253
        %1255 = vmatmul.bf16.gmra.mxu0 %v963
        %v1256 = vpop.f32.mrf.mxu0
        %v1257 = vadd.f32 0.0, %v1256
        %v1258 = vpop.f32.mrf.mxu0
        %v1259 = vadd.f32 0.0, %v1258
        %1260 = vmatmul.bf16.gmra.mxu0 %v964
        %v1261 = vpop.f32.mrf.mxu0
        %v1262 = vadd.f32 0.0, %v1261
        %v1263 = vpop.f32.mrf.mxu0
        %v1264 = vadd.f32 0.0, %v1263
        %1265 = vmatmul.bf16.gmra.mxu0 %v965
        %v1266 = vpop.f32.mrf.mxu0
        %v1267 = vadd.f32 0.0, %v1266
        %v1268 = vpop.f32.mrf.mxu0
        %v1269 = vadd.f32 0.0, %v1268
        %1270 = vmatmul.bf16.gmra.mxu0 %v966
        %v1271 = vpop.f32.mrf.mxu0
        %v1272 = vadd.f32 0.0, %v1271
        %v1273 = vpop.f32.mrf.mxu0
        %v1274 = vadd.f32 0.0, %v1273
        %1275 = vmatmul.bf16.gmra.mxu0 %v967
        %v1276 = vpop.f32.mrf.mxu0
        %v1277 = vadd.f32 0.0, %v1276
        %v1278 = vpop.f32.mrf.mxu0
        %v1279 = vadd.f32 0.0, %v1278
        %1280 = vmatmul.bf16.gmra.mxu0 %v968
        %v1281 = vpop.f32.mrf.mxu0
        %v1282 = vadd.f32 0.0, %v1281
        %v1283 = vpop.f32.mrf.mxu0
        %v1284 = vadd.f32 0.0, %v1283
        %1285 = vmatmul.bf16.gmra.mxu0 %v969
        %v1286 = vpop.f32.mrf.mxu0
        %v1287 = vadd.f32 0.0, %v1286
        %v1288 = vpop.f32.mrf.mxu0
        %v1289 = vadd.f32 0.0, %v1288
        %1290 = vmatmul.bf16.gmra.mxu0 %v970
        %v1291 = vpop.f32.mrf.mxu0
        %v1292 = vadd.f32 0.0, %v1291
        %v1293 = vpop.f32.mrf.mxu0
        %v1294 = vadd.f32 0.0, %v1293
        %1295 = vmatmul.bf16.gmra.mxu0 %v971
        %v1296 = vpop.f32.mrf.mxu0
        %v1297 = vadd.f32 0.0, %v1296
        %v1298 = vpop.f32.mrf.mxu0
        %v1299 = vadd.f32 0.0, %v1298
        %1300 = vmatmul.bf16.gmra.mxu0 %v972
        %v1301 = vpop.f32.mrf.mxu0
        %v1302 = vadd.f32 0.0, %v1301
        %v1303 = vpop.f32.mrf.mxu0
        %v1304 = vadd.f32 0.0, %v1303
        %1305 = vmatmul.bf16.gmra.mxu0 %v973
        %v1306 = vpop.f32.mrf.mxu0
        %v1307 = vadd.f32 0.0, %v1306
        %v1308 = vpop.f32.mrf.mxu0
        %v1309 = vadd.f32 0.0, %v1308
        %1310 = vmatmul.bf16.gmra.mxu0 %v974
        %v1311 = vpop.f32.mrf.mxu0
        %v1312 = vadd.f32 0.0, %v1311
        %v1313 = vpop.f32.mrf.mxu0
        %v1314 = vadd.f32 0.0, %v1313
        %1315 = vmatmul.bf16.gmra.mxu0 %v975
        %v1316 = vpop.f32.mrf.mxu0
        %v1317 = vadd.f32 0.0, %v1316
        %v1318 = vpop.f32.mrf.mxu0
        %v1319 = vadd.f32 0.0, %v1318
        %1320 = vmatmul.bf16.gmra.mxu0 %v976
        %v1321 = vpop.f32.mrf.mxu0
        %v1322 = vadd.f32 0.0, %v1321
        %v1323 = vpop.f32.mrf.mxu0
        %v1324 = vadd.f32 0.0, %v1323
        %1325 = vmatmul.bf16.gmra.mxu0 %v977
        %v1326 = vpop.f32.mrf.mxu0
        %v1327 = vadd.f32 0.0, %v1326
        %v1328 = vpop.f32.mrf.mxu0
        %v1329 = vadd.f32 0.0, %v1328
        %1330 = vmatmul.bf16.gmra.mxu0 %v978
        %v1331 = vpop.f32.mrf.mxu0
        %v1332 = vadd.f32 0.0, %v1331
        %v1333 = vpop.f32.mrf.mxu0
        %v1334 = vadd.f32 0.0, %v1333
        %1335 = vdwg.mxu0
        %v1336 = vmax.f32 %v1087, %v1149
        %v1337 = vmax.f32 %v1089, %v1152
        %v1338 = vmax.f32 %v1092, %v1154
        %v1339 = vmax.f32 %v1094, %v1157
        %v1340 = vmax.f32 %v1097, %v1159
        %v1341 = vmax.f32 %v1099, %v1162
        %v1342 = vmax.f32 %v1102, %v1164
        %v1343 = vmax.f32 %v1104, %v1167
        %v1344 = vmax.f32 %v1107, %v1169
        %v1345 = vmax.f32 %v1109, %v1172
        %v1346 = vmax.f32 %v1112, %v1174
        %v1347 = vmax.f32 %v1114, %v1177
        %v1348 = vmax.f32 %v1117, %v1179
        %v1349 = vmax.f32 %v1119, %v1182
        %v1350 = vmax.f32 %v1122, %v1184
        %v1351 = vmax.f32 %v1124, %v1187
        %v1352 = vmax.f32 %v1127, %v1189
        %v1353 = vmax.f32 %v1129, %v1192
        %v1354 = vmax.f32 %v1132, %v1194
        %v1355 = vmax.f32 %v1134, %v1197
        %v1356 = vmax.f32 %v1137, %v1199
        %v1357 = vmax.f32 %v1139, %v1202
        %v1358 = vmax.f32 %v1142, %v1204
        %v1359 = vmax.f32 %v1144, %v1207
        %v1360 = vmax.f32 %v1147, %v1209
        %v1361 = vmax.f32 %v1212, %v1274
        %v1362 = vmax.f32 %v1214, %v1277
        %v1363 = vmax.f32 %v1217, %v1279
        %v1364 = vmax.f32 %v1219, %v1282
        %v1365 = vmax.f32 %v1222, %v1284
        %v1366 = vmax.f32 %v1224, %v1287
        %v1367 = vmax.f32 %v1227, %v1289
        %v1368 = vmax.f32 %v1229, %v1292
        %v1369 = vmax.f32 %v1232, %v1294
        %v1370 = vmax.f32 %v1234, %v1297
        %v1371 = vmax.f32 %v1237, %v1299
        %v1372 = vmax.f32 %v1239, %v1302
        %v1373 = vmax.f32 %v1242, %v1304
        %v1374 = vmax.f32 %v1244, %v1307
        %v1375 = vmax.f32 %v1247, %v1309
        %v1376 = vmax.f32 %v1249, %v1312
        %v1377 = vmax.f32 %v1252, %v1314
        %v1378 = vmax.f32 %v1254, %v1317
        %v1379 = vmax.f32 %v1257, %v1319
        %v1380 = vmax.f32 %v1259, %v1322
        %v1381 = vmax.f32 %v1262, %v1324
        %v1382 = vmax.f32 %v1264, %v1327
        %v1383 = vmax.f32 %v1267, %v1329
        %v1384 = vmax.f32 %v1269, %v1332
        %v1385 = vmax.f32 %v1272, %v1334
        %v1386 = vmax.f32 %v1336, %v1361
        %v1387 = vmax.f32 %v1337, %v1362
        %v1388 = vmax.f32 %v1338, %v1363
        %v1389 = vmax.f32 %v1339, %v1364
        %v1390 = vmax.f32 %v1340, %v1365
        %v1391 = vmax.f32 %v1341, %v1366
        %v1392 = vmax.f32 %v1342, %v1367
        %v1393 = vmax.f32 %v1343, %v1368
        %v1394 = vmax.f32 %v1344, %v1369
        %v1395 = vmax.f32 %v1345, %v1370
        %v1396 = vmax.f32 %v1346, %v1371
        %v1397 = vmax.f32 %v1347, %v1372
        %v1398 = vmax.f32 %v1348, %v1373
        %v1399 = vmax.f32 %v1349, %v1374
        %v1400 = vmax.f32 %v1350, %v1375
        %v1401 = vmax.f32 %v1351, %v1376
        %v1402 = vmax.f32 %v1352, %v1377
        %v1403 = vmax.f32 %v1353, %v1378
        %v1404 = vmax.f32 %v1354, %v1379
        %v1405 = vmax.f32 %v1355, %v1380
        %v1406 = vmax.f32 %v1356, %v1381
        %v1407 = vmax.f32 %v1357, %v1382
        %v1408 = vmax.f32 %v1358, %v1383
        %v1409 = vmax.f32 %v1359, %v1384
        %v1410 = vmax.f32 %v1360, %v1385
        %v1411 = vld [vmem:[%s2] sm:$0x1]
        %v1413 = vperm.slane %v1411, 0
        %v1415 = vadd.f32 %v1386, %v1413
        %v1416 = vadd.f32 %v1387, %v1413
        %v1417 = vadd.f32 %v1388, %v1413
        %v1418 = vadd.f32 %v1389, %v1413
        %v1419 = vadd.f32 %v1390, %v1413
        %v1420 = vadd.f32 %v1391, %v1413
        %v1421 = vadd.f32 %v1392, %v1413
        %v1422 = vadd.f32 %v1393, %v1413
        %v1423 = vadd.f32 %v1394, %v1413
        %v1424 = vadd.f32 %v1395, %v1413
        %v1425 = vadd.f32 %v1396, %v1413
        %v1426 = vadd.f32 %v1397, %v1413
        %v1427 = vadd.f32 %v1398, %v1413
        %v1428 = vadd.f32 %v1399, %v1413
        %v1429 = vadd.f32 %v1400, %v1413
        %v1430 = vadd.f32 %v1401, %v1413
        %v1431 = vadd.f32 %v1402, %v1413
        %v1432 = vadd.f32 %v1403, %v1413
        %v1433 = vadd.f32 %v1404, %v1413
        %v1434 = vadd.f32 %v1405, %v1413
        %v1435 = vadd.f32 %v1406, %v1413
        %v1436 = vadd.f32 %v1407, %v1413
        %v1437 = vadd.f32 %v1408, %v1413
        %v1438 = vadd.f32 %v1409, %v1413
        %v1439 = vadd.f32 %v1410, %v1413
        %v1440 = vmax.f32 %v1415, 0.0
        %v1441 = vmax.f32 %v1416, 0.0
        %v1442 = vmax.f32 %v1417, 0.0
        %v1443 = vmax.f32 %v1418, 0.0
        %v1444 = vmax.f32 %v1419, 0.0
        %v1445 = vmax.f32 %v1420, 0.0
        %v1446 = vmax.f32 %v1421, 0.0
        %v1447 = vmax.f32 %v1422, 0.0
        %v1448 = vmax.f32 %v1423, 0.0
        %v1449 = vmax.f32 %v1424, 0.0
        %v1450 = vmax.f32 %v1425, 0.0
        %v1451 = vmax.f32 %v1426, 0.0
        %v1452 = vmax.f32 %v1427, 0.0
        %v1453 = vmax.f32 %v1428, 0.0
        %v1454 = vmax.f32 %v1429, 0.0
        %v1455 = vmax.f32 %v1430, 0.0
        %v1456 = vmax.f32 %v1431, 0.0
        %v1457 = vmax.f32 %v1432, 0.0
        %v1458 = vmax.f32 %v1433, 0.0
        %v1459 = vmax.f32 %v1434, 0.0
        %v1460 = vmax.f32 %v1435, 0.0
        %v1461 = vmax.f32 %v1436, 0.0
        %v1462 = vmax.f32 %v1437, 0.0
        %v1463 = vmax.f32 %v1438, 0.0
        %v1464 = vmax.f32 %v1439, 0.0
        %v1465 = vpack.c.bf16 %v1440, %v1440
        %v1466 = vpack.c.bf16 %v1441, %v1441
        %v1467 = vpack.c.bf16 %v1442, %v1442
        %v1468 = vpack.c.bf16 %v1443, %v1443
        %v1469 = vpack.c.bf16 %v1444, %v1444
        %v1470 = vpack.c.bf16 %v1445, %v1445
        %v1471 = vpack.c.bf16 %v1446, %v1446
        %v1472 = vpack.c.bf16 %v1447, %v1447
        %v1473 = vpack.c.bf16 %v1448, %v1448
        %v1474 = vpack.c.bf16 %v1449, %v1449
        %v1475 = vpack.c.bf16 %v1450, %v1450
        %v1476 = vpack.c.bf16 %v1451, %v1451
        %v1477 = vpack.c.bf16 %v1452, %v1452
        %v1478 = vpack.c.bf16 %v1453, %v1453
        %v1479 = vpack.c.bf16 %v1454, %v1454
        %v1480 = vpack.c.bf16 %v1455, %v1455
        %v1481 = vpack.c.bf16 %v1456, %v1456
        %v1482 = vpack.c.bf16 %v1457, %v1457
        %v1483 = vpack.c.bf16 %v1458, %v1458
        %v1484 = vpack.c.bf16 %v1459, %v1459
        %v1485 = vpack.c.bf16 %v1460, %v1460
        %v1486 = vpack.c.bf16 %v1461, %v1461
        %v1487 = vpack.c.bf16 %v1462, %v1462
        %v1488 = vpack.c.bf16 %v1463, %v1463
        %v1489 = vpack.c.bf16 %v1464, %v1464
        %1490 = vst [vmem:[%s611] sm:$0xf] %v1465
        %1491 = vst [vmem:[%s611 + $0x4] sm:$0xf] %v1466
        %1492 = vst [vmem:[%s611 + $0x8] sm:$0xf] %v1467
        %1493 = vst [vmem:[%s611 + $0xc] sm:$0xf] %v1468
        %1494 = vst [vmem:[%s611 + $0x10] sm:$0xf] %v1469
        %1495 = vst [vmem:[%s611 + $0x14] sm:$0xf] %v1470
        %1496 = vst [vmem:[%s611 + $0x18] sm:$0xf] %v1471
        %1497 = vst [vmem:[%s611 + $0x1c] sm:$0xf] %v1472
        %1498 = vst [vmem:[%s611 + $0x20] sm:$0xf] %v1473
        %1499 = vst [vmem:[%s611 + $0x24] sm:$0xf] %v1474
        %1500 = vst [vmem:[%s611 + $0x28] sm:$0xf] %v1475
        %1501 = vst [vmem:[%s611 + $0x2c] sm:$0xf] %v1476
        %1502 = vst [vmem:[%s611 + $0x30] sm:$0xf] %v1477
        %1503 = vst [vmem:[%s611 + $0x34] sm:$0xf] %v1478
        %1504 = vst [vmem:[%s611 + $0x38] sm:$0xf] %v1479
        %1505 = vst [vmem:[%s611 + $0x3c] sm:$0xf] %v1480
        %1506 = vst [vmem:[%s611 + $0x40] sm:$0xf] %v1481
        %1507 = vst [vmem:[%s611 + $0x44] sm:$0xf] %v1482
        %1508 = vst [vmem:[%s611 + $0x48] sm:$0xf] %v1483
        %1509 = vst [vmem:[%s611 + $0x4c] sm:$0xf] %v1484
        %1510 = vst [vmem:[%s611 + $0x50] sm:$0xf] %v1485
        %1511 = vst [vmem:[%s611 + $0x54] sm:$0xf] %v1486
        %1512 = vst [vmem:[%s611 + $0x58] sm:$0xf] %v1487
        %1513 = vst [vmem:[%s611 + $0x5c] sm:$0xf] %v1488
        %1514 = vst [vmem:[%s611 + $0x60] sm:$0xf] %v1489
        %s1515 = smul.u32 25, %s14
        %p1516 = scmp.lt.s32.totalorder %s1515, 49
        %s1517 = scalar_select %p1516, %s1515, 49
        %s1518 = smul.addr %s1517, 4
        %s1519 = scalar_lea.vmem %s3, %s1518
        // Predicated region
        $region74: #{lenet4_forward.3} parent=68 // pred_check
          %p1520 = pneg %p100
        $region75: #{lenet4_forward.3} parent=68 // pred_check_branch
          %1522 = sbr.rel (%p1520) target = $region77
        $region76: #{lenet4_forward.3} parent=68 // pred_region
          %s1523 = smul.u32 25, %s14
        $region77: #{lenet4_forward.3} parent=68 // pred_fallthru
          _
      $region69: #{lenet4_forward.3} parent=5 // pred_fallthru
        _
      %p1524 = scmp.le.s32.totalorder 2, %s9
      // Predicated region
      $region78: #{lenet4_forward.3} parent=5 // pred_check
        %p1525 = pneg %p1524
      $region79: #{lenet4_forward.3} parent=5 // pred_check_branch
        %1527 = sbr.rel (%p1525) target = $region81
      $region80: #{lenet4_forward.3} parent=5 // pred_region
        %s1528 = ssub.s32 %s9, 2
        // Predicated region
        $region82: #{lenet4_forward.3} parent=80 // pred_check
          %p1529 = pneg %p106
        $region83: #{lenet4_forward.3} parent=80 // pred_check_branch
          %1531 = sbr.rel (%p1529) target = $region85
        $region84: #{lenet4_forward.3} parent=80 // pred_region
          %s1532 = smul.u32 25, %s15
          %p1533 = scmp.lt.s32.totalorder %s1532, 49
          %s1534 = scalar_select %p1533, %s1532, 49
          %s1535 = smul.addr %s1534, 4
          %s1536 = scalar_lea.vmem %s3, %s1535
        $region85: #{lenet4_forward.3} parent=80 // pred_fallthru
          _
      $region81: #{lenet4_forward.3} parent=5 // pred_fallthru
        _
    $region6: #{lenet4_forward.3} parent=1 // loop_footer
      %s13 = sadd.s32 1, %s9
    $region7: #{lenet4_forward.3} parent=1 // loop_footer_branch
      %8 = sbr.rel target = $region3
    $region8: #{lenet4_forward.3} parent=1 // loop_exit
      _

// kernel: lenet4_forward.4
$region0: #{lenet4_forward.4}
  #allocation0 [shape = 'u32[]', space=smem, size = 0x4, offset = 0x4, fixed_abs, tag = 'smem constant byte address 0x4 - core index']
  #allocation1 [shape = 'u32[72,128]{1,0:T(1,128)}', space=vmem, size = 0x9000, scoped, tag = 'internal scratch']
  %s0 = inlined_call_operand.vmem [shape: bf16[4,64,256], index: 0, kind: input, shape index: {}]
  %s1 = inlined_call_operand.vmem [shape: bf16[256,128], index: 1, kind: input, shape index: {}]
  %s2 = inlined_call_operand.vmem [shape: f32[1,128], index: 2, kind: input, shape index: {}]
  %s3 = inlined_call_operand.vmem [shape: bf16[64,128], index: 3, kind: output, shape index: {}]
  %s4 = sld [smem:[#allocation0]]
  $region83: #{lenet4_forward.4} parent=0
    _
  %s6 = ssub.s32 1, %s4
  %s7 = scalar_select 0, %s6, %s4
  $region1: #{lenet4_forward.4} parent=0
    #allocation2 [shape = 'u8[131072]{0}', space=vmem, size = 0x20000, scoped, tag = 'input window, operand 0']
    loop: start=0, step=1, limit=4
    $region2: #{lenet4_forward.4} parent=1 // loop_pre_header
      _
    $region3: #{lenet4_forward.4} parent=1 // loop_header
      %s9 = sphi 0, %s13
      %p10 = scmp.ge.s32.totalorder %s9, 4
      %s19 = sphi 0, %s21
      %s22 = sphi 0, %s19
      %s23 = sphi 0, %s22
      %s39 = sphi 0, %s23
      %s43 = sphi 0, %s43
      %s45 = sphi 0, %s43
      %s46 = sphi 0, %s45
      %s60 = sphi 0, %s46
      %s64 = sphi 0, %s64
      %s66 = sphi 0, %s64
      %s67 = sphi 0, %s66
      %s81 = sphi 0, %s67
      %s87 = sphi 0, %s89
      %s90 = sphi 0, %s87
      %s91 = sphi 0, %s90
      %s107 = sphi 0, %s91
    $region4: #{lenet4_forward.4} parent=1 // loop_header_branch
      %12 = sbr.rel (%p10) target = $region8
    $region5: #{lenet4_forward.4} parent=1 // loop_body
      %s14 = ssub.s32 %s9, 1
      %s15 = ssub.s32 %s9, 2
      %s16 = sadd.s32 %s9, 1
      %s17 = ssub.s32 %s9, %s16
      %p18 = scmp.eq.s32.totalorder %s17, 0
      %s20 = sadd.s32 %s19, 1
      %s21 = scalar_select %p18, %s19, %s20
      %p24 = pneg %p18
      %p25 = scmp.eq.s32.totalorder %s9, 1
      %p26 = por %p24, %p25
      %p27 = scmp.ne.s32.totalorder %s19, %s22
      %p28 = scmp.eq.s32.totalorder %s9, 0
      %p29 = por %p27, %p28
      %p30 = scmp.ne.s32.totalorder %s19, %s22
      %p31 = scmp.eq.s32.totalorder %s14, 1
      %p32 = por %p30, %p31
      %p33 = scmp.ne.s32.totalorder %s22, %s23
      %p34 = scmp.eq.s32.totalorder %s14, 0
      %p35 = por %p33, %p34
      %p36 = scmp.ne.s32.totalorder %s22, %s23
      %p37 = scmp.eq.s32.totalorder %s15, 1
      %p38 = por %p36, %p37
      %p40 = scmp.ne.s32.totalorder %s23, %s39
      %p41 = scmp.eq.s32.totalorder %s15, 0
      %p42 = por %p40, %p41
      %s44 = sadd.s32 %s43, 1
      %p47 = scmp.eq.s32.totalorder %s9, 1
      %p48 = scmp.ne.s32.totalorder %s43, %s45
      %p49 = scmp.eq.s32.totalorder %s9, 0
      %p50 = por %p48, %p49
      %p51 = scmp.ne.s32.totalorder %s43, %s45
      %p52 = scmp.eq.s32.totalorder %s14, 1
      %p53 = por %p51, %p52
      %p54 = scmp.ne.s32.totalorder %s45, %s46
      %p55 = scmp.eq.s32.totalorder %s14, 0
      %p56 = por %p54, %p55
      %p57 = scmp.ne.s32.totalorder %s45, %s46
      %p58 = scmp.eq.s32.totalorder %s15, 1
      %p59 = por %p57, %p58
      %p61 = scmp.ne.s32.totalorder %s46, %s60
      %p62 = scmp.eq.s32.totalorder %s15, 0
      %p63 = por %p61, %p62
      %s65 = sadd.s32 %s64, 1
      %p68 = scmp.eq.s32.totalorder %s9, 1
      %p69 = scmp.ne.s32.totalorder %s64, %s66
      %p70 = scmp.eq.s32.totalorder %s9, 0
      %p71 = por %p69, %p70
      %p72 = scmp.ne.s32.totalorder %s64, %s66
      %p73 = scmp.eq.s32.totalorder %s14, 1
      %p74 = por %p72, %p73
      %p75 = scmp.ne.s32.totalorder %s66, %s67
      %p76 = scmp.eq.s32.totalorder %s14, 0
      %p77 = por %p75, %p76
      %p78 = scmp.ne.s32.totalorder %s66, %s67
      %p79 = scmp.eq.s32.totalorder %s15, 1
      %p80 = por %p78, %p79
      %p82 = scmp.ne.s32.totalorder %s67, %s81
      %p83 = scmp.eq.s32.totalorder %s15, 0
      %p84 = por %p82, %p83
      %s85 = ssub.s32 %s9, %s16
      %p86 = scmp.eq.s32.totalorder %s85, 0
      %s88 = sadd.s32 %s87, 1
      %s89 = scalar_select %p86, %s87, %s88
      %p92 = pneg %p86
      %p93 = scmp.eq.s32.totalorder %s9, 1
      %p94 = por %p92, %p93
      %p95 = scmp.ne.s32.totalorder %s87, %s90
      %p96 = scmp.eq.s32.totalorder %s9, 0
      %p97 = por %p95, %p96
      %p98 = scmp.ne.s32.totalorder %s87, %s90
      %p99 = scmp.eq.s32.totalorder %s14, 1
      %p100 = por %p98, %p99
      %p101 = scmp.ne.s32.totalorder %s90, %s91
      %p102 = scmp.eq.s32.totalorder %s14, 0
      %p103 = por %p101, %p102
      %p104 = scmp.ne.s32.totalorder %s90, %s91
      %p105 = scmp.eq.s32.totalorder %s15, 1
      %p106 = por %p104, %p105
      %p108 = scmp.ne.s32.totalorder %s91, %s107
      %p109 = scmp.eq.s32.totalorder %s15, 0
      %p110 = por %p108, %p109
      %p111 = scmp.le.s32.totalorder 1, %s9
      %p112 = scmp.lt.s32.totalorder %s9, 3
      %p113 = pnand %p111, %p112
      %p114 = pneg %p113
      // Predicated region
      $region9: #{lenet4_forward.4} parent=5 // pred_check
        _
      $region10: #{lenet4_forward.4} parent=5 // pred_check_branch
        %116 = sbr.rel (%p113) target = $region12
      $region11: #{lenet4_forward.4} parent=5 // pred_region
        %s117 = ssub.s32 %s9, 1
        // Predicated region
        $region13: #{lenet4_forward.4} parent=11 // pred_check
          %p118 = pneg %p56
        $region14: #{lenet4_forward.4} parent=11 // pred_check_branch
          %120 = sbr.rel (%p118) target = $region16
        $region15: #{lenet4_forward.4} parent=11 // pred_region
          _
        $region16: #{lenet4_forward.4} parent=11 // pred_fallthru
          _
        // Predicated region
        $region17: #{lenet4_forward.4} parent=11 // pred_check
          %p121 = pneg %p77
        $region18: #{lenet4_forward.4} parent=11 // pred_check_branch
          %123 = sbr.rel (%p121) target = $region20
        $region19: #{lenet4_forward.4} parent=11 // pred_region
          _
        $region20: #{lenet4_forward.4} parent=11 // pred_fallthru
          _
      $region12: #{lenet4_forward.4} parent=5 // pred_fallthru
        _
      %p124 = scmp.lt.s32.totalorder %s9, 2
      // Predicated region
      $region21: #{lenet4_forward.4} parent=5 // pred_check
        %p125 = pneg %p124
      $region22: #{lenet4_forward.4} parent=5 // pred_check_branch
        %127 = sbr.rel (%p125) target = $region24
      $region23: #{lenet4_forward.4} parent=5 // pred_region
        // Predicated region
        $region25: #{lenet4_forward.4} parent=23 // pred_check
          %p128 = pneg %p29
        $region26: #{lenet4_forward.4} parent=23 // pred_check_branch
          %130 = sbr.rel (%p128) target = $region28
        $region27: #{lenet4_forward.4} parent=23 // pred_region
          %s131 = sand.u32 %s19, 1
          %s132 = sand.u32 %s19, 1
          %s133 = smul.addr %s132, 128
          %s134 = scalar_lea.vmem [#allocation2], %s133
          %s135 = smul.u32 4, %s9
          %s136 = smul.addr %s135, 2
          %s137 = smul.addr %s136, 4
          %s138 = scalar_lea.vmem %s0, %s137
          // Predicated region
          $region29: #{lenet4_forward.4} parent=27 // pred_check
            _
          $region30: #{lenet4_forward.4} parent=27 // pred_check_branch
            %140 = sbr.rel (0) target = $region32
          $region31: #{lenet4_forward.4} parent=27 // pred_region
            // Predicated region
            $region33: #{lenet4_forward.4} parent=31 // pred_check
              _
            $region34: #{lenet4_forward.4} parent=31 // pred_check_branch
              %142 = sbr.rel (0) target = $region36
            $region35: #{lenet4_forward.4} parent=31 // pred_region
              // Predicated region
              $region48: #{lenet4_forward.4} parent=35 // pred_check
                _
              $region49: #{lenet4_forward.4} parent=35 // pred_check_branch
                %188 = sbr.rel (0) target = $region51
              $region50: #{lenet4_forward.4} parent=35 // pred_region
                loop: start=0, step=1, limit=1
                $region52: #{lenet4_forward.4} parent=50 // loop_pre_header
                  _
                $region53: #{lenet4_forward.4} parent=50 // loop_header
                  %s190 = sphi 0, %s194
                  %p191 = scmp.ge.s32.totalorder %s190, 1
                  %s195 = sphi %s138, %s138
                  %s196 = sphi %s134, %s134
                $region54: #{lenet4_forward.4} parent=50 // loop_header_branch
                  %193 = sbr.rel (%p191) target = $region58
                $region55: #{lenet4_forward.4} parent=50 // loop_body
                  %v197 = vld [vmem:[%s195] sm:$0xff]
                  %198 = vst [vmem:[%s196] sm:$0xff] %v197
                  %v199 = vld [vmem:[%s195 + $0x8] sm:$0xff]
                  %200 = vst [vmem:[%s196 + $0x8] sm:$0xff] %v199
                  %v201 = vld [vmem:[%s195 + $0x10] sm:$0xff]
                  %202 = vst [vmem:[%s196 + $0x10] sm:$0xff] %v201
                  %v203 = vld [vmem:[%s195 + $0x18] sm:$0xff]
                  %204 = vst [vmem:[%s196 + $0x18] sm:$0xff] %v203
                  %v205 = vld [vmem:[%s195 + $0x40] sm:$0xff]
                  %206 = vst [vmem:[%s196 + $0x20] sm:$0xff] %v205
                  %v207 = vld [vmem:[%s195 + $0x48] sm:$0xff]
                  %208 = vst [vmem:[%s196 + $0x28] sm:$0xff] %v207
                  %v209 = vld [vmem:[%s195 + $0x50] sm:$0xff]
                  %210 = vst [vmem:[%s196 + $0x30] sm:$0xff] %v209
                  %v211 = vld [vmem:[%s195 + $0x58] sm:$0xff]
                  %212 = vst [vmem:[%s196 + $0x38] sm:$0xff] %v211
                  %v213 = vld [vmem:[%s195 + $0x80] sm:$0xff]
                  %214 = vst [vmem:[%s196 + $0x40] sm:$0xff] %v213
                  %v215 = vld [vmem:[%s195 + $0x88] sm:$0xff]
                  %216 = vst [vmem:[%s196 + $0x48] sm:$0xff] %v215
                  %v217 = vld [vmem:[%s195 + $0x90] sm:$0xff]
                  %218 = vst [vmem:[%s196 + $0x50] sm:$0xff] %v217
                  %v219 = vld [vmem:[%s195 + $0x98] sm:$0xff]
                  %220 = vst [vmem:[%s196 + $0x58] sm:$0xff] %v219
                  %v221 = vld [vmem:[%s195 + $0xc0] sm:$0xff]
                  %222 = vst [vmem:[%s196 + $0x60] sm:$0xff] %v221
                  %v223 = vld [vmem:[%s195 + $0xc8] sm:$0xff]
                  %224 = vst [vmem:[%s196 + $0x68] sm:$0xff] %v223
                  %v225 = vld [vmem:[%s195 + $0xd0] sm:$0xff]
                  %226 = vst [vmem:[%s196 + $0x70] sm:$0xff] %v225
                  %v227 = vld [vmem:[%s195 + $0xd8] sm:$0xff]
                  %228 = vst [vmem:[%s196 + $0x78] sm:$0xff] %v227
                $region56: #{lenet4_forward.4} parent=50 // loop_footer
                  %s194 = sadd.s32 1, %s190
                $region57: #{lenet4_forward.4} parent=50 // loop_footer_branch
                  %189 = sbr.rel target = $region53
                $region58: #{lenet4_forward.4} parent=50 // loop_exit
                  _
              $region51: #{lenet4_forward.4} parent=35 // pred_fallthru
                _
              // Predicated region
              $region59: #{lenet4_forward.4} parent=35 // pred_check
                _
              $region60: #{lenet4_forward.4} parent=35 // pred_check_branch
                %230 = sbr.rel target = $region62
              $region61: #{lenet4_forward.4} parent=35 // pred_region
                _
              $region62: #{lenet4_forward.4} parent=35 // pred_fallthru
                _
            $region36: #{lenet4_forward.4} parent=31 // pred_fallthru
              _
            // Predicated region
            $region37: #{lenet4_forward.4} parent=31 // pred_check
              _
            $region38: #{lenet4_forward.4} parent=31 // pred_check_branch
              %144 = sbr.rel target = $region40
            $region39: #{lenet4_forward.4} parent=31 // pred_region
              %s146 = ssub.s32 256, 1
              loop: start=0, step=1, limit=1
              $region41: #{lenet4_forward.4} parent=39 // loop_pre_header
                _
              $region42: #{lenet4_forward.4} parent=39 // loop_header
                %s148 = sphi 0, %s152
                %p149 = scmp.ge.s32.totalorder %s148, 1
                %s153 = sphi %s138, %s138
                %s154 = sphi %s134, %s134
              $region43: #{lenet4_forward.4} parent=39 // loop_header_branch
                %151 = sbr.rel (%p149) target = $region47
              $region44: #{lenet4_forward.4} parent=39 // loop_body
                %v155 = vld [vmem:[%s153] sm:%s146]
                %156 = vst [vmem:[%s154] sm:%s146] %v155
                %v157 = vld [vmem:[%s153 + $0x8] sm:%s146]
                %158 = vst [vmem:[%s154 + $0x8] sm:%s146] %v157
                %v159 = vld [vmem:[%s153 + $0x10] sm:%s146]
                %160 = vst [vmem:[%s154 + $0x10] sm:%s146] %v159
                %v161 = vld [vmem:[%s153 + $0x18] sm:%s146]
                %162 = vst [vmem:[%s154 + $0x18] sm:%s146] %v161
                %v163 = vld [vmem:[%s153 + $0x40] sm:%s146]
                %164 = vst [vmem:[%s154 + $0x20] sm:%s146] %v163
                %v165 = vld [vmem:[%s153 + $0x48] sm:%s146]
                %166 = vst [vmem:[%s154 + $0x28] sm:%s146] %v165
                %v167 = vld [vmem:[%s153 + $0x50] sm:%s146]
                %168 = vst [vmem:[%s154 + $0x30] sm:%s146] %v167
                %v169 = vld [vmem:[%s153 + $0x58] sm:%s146]
                %170 = vst [vmem:[%s154 + $0x38] sm:%s146] %v169
                %v171 = vld [vmem:[%s153 + $0x80] sm:%s146]
                %172 = vst [vmem:[%s154 + $0x40] sm:%s146] %v171
                %v173 = vld [vmem:[%s153 + $0x88] sm:%s146]
                %174 = vst [vmem:[%s154 + $0x48] sm:%s146] %v173
                %v175 = vld [vmem:[%s153 + $0x90] sm:%s146]
                %176 = vst [vmem:[%s154 + $0x50] sm:%s146] %v175
                %v177 = vld [vmem:[%s153 + $0x98] sm:%s146]
                %178 = vst [vmem:[%s154 + $0x58] sm:%s146] %v177
                %v179 = vld [vmem:[%s153 + $0xc0] sm:%s146]
                %180 = vst [vmem:[%s154 + $0x60] sm:%s146] %v179
                %v181 = vld [vmem:[%s153 + $0xc8] sm:%s146]
                %182 = vst [vmem:[%s154 + $0x68] sm:%s146] %v181
                %v183 = vld [vmem:[%s153 + $0xd0] sm:%s146]
                %184 = vst [vmem:[%s154 + $0x70] sm:%s146] %v183
                %v185 = vld [vmem:[%s153 + $0xd8] sm:%s146]
                %186 = vst [vmem:[%s154 + $0x78] sm:%s146] %v185
              $region45: #{lenet4_forward.4} parent=39 // loop_footer
                %s152 = sadd.s32 1, %s148
              $region46: #{lenet4_forward.4} parent=39 // loop_footer_branch
                %147 = sbr.rel target = $region42
              $region47: #{lenet4_forward.4} parent=39 // loop_exit
                _
            $region40: #{lenet4_forward.4} parent=31 // pred_fallthru
              _
          $region32: #{lenet4_forward.4} parent=27 // pred_fallthru
            _
          %231 = vnop
        $region28: #{lenet4_forward.4} parent=23 // pred_fallthru
          _
      $region24: #{lenet4_forward.4} parent=5 // pred_fallthru
        _
      %p232 = scmp.le.s32.totalorder 1, %s9
      %p233 = scmp.lt.s32.totalorder %s9, 3
      %p234 = pnand %p232, %p233
      %p235 = pneg %p234
      // Predicated region
      $region63: #{lenet4_forward.4} parent=5 // pred_check
        _
      $region64: #{lenet4_forward.4} parent=5 // pred_check_branch
        %237 = sbr.rel (%p234) target = $region66
      $region65: #{lenet4_forward.4} parent=5 // pred_region
        %s238 = ssub.s32 %s9, 1
        %s239 = sand.u32 %s22, 1
        %s240 = sand.u32 %s22, 1
        %s241 = smul.addr %s240, 128
        %s242 = scalar_lea.vmem [#allocation2], %s241
        // Predicated region
        $region67: #{lenet4_forward.4} parent=65 // pred_check
          %p243 = pneg %p35
        $region68: #{lenet4_forward.4} parent=65 // pred_check_branch
          %245 = sbr.rel (%p243) target = $region70
        $region69: #{lenet4_forward.4} parent=65 // pred_region
          _
        $region70: #{lenet4_forward.4} parent=65 // pred_fallthru
          _
        %s246 = sand.u32 %s22, 1
        %s247 = sand.u32 %s22, 1
        %s248 = smul.addr %s247, 128
        %s249 = scalar_lea.vmem [#allocation2], %s248
        %p250 = pneg %p35
        %p251 = pneg %p32
        %p252 = pneg %p56
        %p253 = pneg %p53
        %p254 = pneg %p77
        %p255 = pneg %p74
        %p256 = pneg %p103
        %p257 = pneg %p100
        %s258 = smul.u32 4, %s14
        %p259 = scmp.lt.s32.totalorder %s258, 7
        %s260 = scalar_select %p259, %s258, 7
        %s261 = smul.addr %s260, 4
        %s262 = scalar_lea.vmem %s3, %s261
        %s263 = smul.u32 4, %s14
        %s264 = smul.u32 4, %s14
        %p265 = scmp.lt.s32.totalorder %s264, 7
        %s266 = scalar_select %p265, %s264, 7
        %s267 = smul.addr %s266, 4
        %s268 = scalar_lea.vmem %s3, %s267
        %s269 = smul.u32 4, %s14
        %v270 = vld [vmem:[%s242] sm:$0xff]
        %v271 = vld [vmem:[%s242 + $0x8] sm:$0xff]
        %v272 = vld [vmem:[%s242 + $0x10] sm:$0xff]
        %v273 = vld [vmem:[%s242 + $0x18] sm:$0xff]
        %v274 = vld [vmem:[%s242 + $0x20] sm:$0xff]
        %v275 = vld [vmem:[%s242 + $0x28] sm:$0xff]
        %v276 = vld [vmem:[%s242 + $0x30] sm:$0xff]
        %v277 = vld [vmem:[%s242 + $0x38] sm:$0xff]
        %v278 = vld [vmem:[%s242 + $0x40] sm:$0xff]
        %v279 = vld [vmem:[%s242 + $0x48] sm:$0xff]
        %v280 = vld [vmem:[%s242 + $0x50] sm:$0xff]
        %v281 = vld [vmem:[%s242 + $0x58] sm:$0xff]
        %v282 = vld [vmem:[%s242 + $0x60] sm:$0xff]
        %v283 = vld [vmem:[%s242 + $0x68] sm:$0xff]
        %v284 = vld [vmem:[%s242 + $0x70] sm:$0xff]
        %v285 = vld [vmem:[%s242 + $0x78] sm:$0xff]
        %v286 = vld [vmem:[%s1] sm:$0xf]
        %v287 = vld [vmem:[%s1 + $0x4] sm:$0xf]
        %v288 = vld [vmem:[%s1 + $0x8] sm:$0xf]
        %v289 = vld [vmem:[%s1 + $0xc] sm:$0xf]
        %v290 = vld [vmem:[%s1 + $0x10] sm:$0xf]
        %v291 = vld [vmem:[%s1 + $0x14] sm:$0xf]
        %v292 = vld [vmem:[%s1 + $0x18] sm:$0xf]
        %v293 = vld [vmem:[%s1 + $0x1c] sm:$0xf]
        %v294 = vld [vmem:[%s1 + $0x20] sm:$0xf]
        %v295 = vld [vmem:[%s1 + $0x24] sm:$0xf]
        %v296 = vld [vmem:[%s1 + $0x28] sm:$0xf]
        %v297 = vld [vmem:[%s1 + $0x2c] sm:$0xf]
        %v298 = vld [vmem:[%s1 + $0x30] sm:$0xf]
        %v299 = vld [vmem:[%s1 + $0x34] sm:$0xf]
        %v300 = vld [vmem:[%s1 + $0x38] sm:$0xf]
        %v301 = vld [vmem:[%s1 + $0x3c] sm:$0xf]
        %v302 = vld [vmem:[%s1 + $0x40] sm:$0xf]
        %v303 = vld [vmem:[%s1 + $0x44] sm:$0xf]
        %v304 = vld [vmem:[%s1 + $0x48] sm:$0xf]
        %v305 = vld [vmem:[%s1 + $0x4c] sm:$0xf]
        %v306 = vld [vmem:[%s1 + $0x50] sm:$0xf]
        %v307 = vld [vmem:[%s1 + $0x54] sm:$0xf]
        %v308 = vld [vmem:[%s1 + $0x58] sm:$0xf]
        %v309 = vld [vmem:[%s1 + $0x5c] sm:$0xf]
        %v310 = vld [vmem:[%s1 + $0x60] sm:$0xf]
        %v311 = vld [vmem:[%s1 + $0x64] sm:$0xf]
        %v312 = vld [vmem:[%s1 + $0x68] sm:$0xf]
        %v313 = vld [vmem:[%s1 + $0x6c] sm:$0xf]
        %v314 = vld [vmem:[%s1 + $0x70] sm:$0xf]
        %v315 = vld [vmem:[%s1 + $0x74] sm:$0xf]
        %v316 = vld [vmem:[%s1 + $0x78] sm:$0xf]
        %v317 = vld [vmem:[%s1 + $0x7c] sm:$0xf]
        %v334 = vunpack.c.l.b16 %v270
        %v335 = vunpack.c.h.b16 %v270
        %v336 = vunpack.c.l.b16 %v271
        %v337 = vunpack.c.h.b16 %v271
        %v338 = vunpack.c.l.b16 %v272
        %v339 = vunpack.c.h.b16 %v272
        %v340 = vunpack.c.l.b16 %v273
        %v341 = vunpack.c.h.b16 %v273
        %v342 = vunpack.c.l.b16 %v274
        %v343 = vunpack.c.h.b16 %v274
        %v344 = vunpack.c.l.b16 %v275
        %v345 = vunpack.c.h.b16 %v275
        %v346 = vunpack.c.l.b16 %v276
        %v347 = vunpack.c.h.b16 %v276
        %v348 = vunpack.c.l.b16 %v277
        %v349 = vunpack.c.h.b16 %v277
        %v350 = vunpack.c.l.b16 %v278
        %v351 = vunpack.c.h.b16 %v278
        %v352 = vunpack.c.l.b16 %v279
        %v353 = vunpack.c.h.b16 %v279
        %v354 = vunpack.c.l.b16 %v280
        %v355 = vunpack.c.h.b16 %v280
        %v356 = vunpack.c.l.b16 %v281
        %v357 = vunpack.c.h.b16 %v281
        %v358 = vunpack.c.l.b16 %v282
        %v359 = vunpack.c.h.b16 %v282
        %v360 = vunpack.c.l.b16 %v283
        %v361 = vunpack.c.h.b16 %v283
        %v362 = vunpack.c.l.b16 %v284
        %v363 = vunpack.c.h.b16 %v284
        %v364 = vunpack.c.l.b16 %v285
        %v365 = vunpack.c.h.b16 %v285
        %v366 = vpack.c.b16 %v336, %v334
        %v367 = vpack.c.b16 %v337, %v335
        %v368 = vpack.c.b16 %v340, %v338
        %v369 = vpack.c.b16 %v341, %v339
        %v370 = vpack.c.b16 %v344, %v342
        %v371 = vpack.c.b16 %v345, %v343
        %v372 = vpack.c.b16 %v348, %v346
        %v373 = vpack.c.b16 %v349, %v347
        %v374 = vpack.c.b16 %v352, %v350
        %v375 = vpack.c.b16 %v353, %v351
        %v376 = vpack.c.b16 %v356, %v354
        %v377 = vpack.c.b16 %v357, %v355
        %v378 = vpack.c.b16 %v360, %v358
        %v379 = vpack.c.b16 %v361, %v359
        %v380 = vpack.c.b16 %v364, %v362
        %v381 = vpack.c.b16 %v365, %v363
        %v430 = vunpack.c.l.b16 %v286
        %v431 = vunpack.c.l.b16 %v287
        %v432 = vunpack.c.l.b16 %v288
        %v433 = vunpack.c.l.b16 %v289
        %v434 = vunpack.c.l.b16 %v290
        %v435 = vunpack.c.l.b16 %v291
        %v436 = vunpack.c.l.b16 %v292
        %v437 = vunpack.c.l.b16 %v293
        %v438 = vunpack.c.l.b16 %v294
        %v439 = vunpack.c.l.b16 %v295
        %v440 = vunpack.c.l.b16 %v296
        %v441 = vunpack.c.l.b16 %v297
        %v442 = vunpack.c.l.b16 %v298
        %v443 = vunpack.c.l.b16 %v299
        %v444 = vunpack.c.l.b16 %v300
        %v445 = vunpack.c.l.b16 %v301
        %v446 = vunpack.c.l.b16 %v302
        %v447 = vunpack.c.l.b16 %v303
        %v448 = vunpack.c.l.b16 %v304
        %v449 = vunpack.c.l.b16 %v305
        %v450 = vunpack.c.l.b16 %v306
        %v451 = vunpack.c.l.b16 %v307
        %v452 = vunpack.c.l.b16 %v308
        %v453 = vunpack.c.l.b16 %v309
        %v454 = vunpack.c.l.b16 %v310
        %v455 = vunpack.c.l.b16 %v311
        %v456 = vunpack.c.l.b16 %v312
        %v457 = vunpack.c.l.b16 %v313
        %v458 = vunpack.c.l.b16 %v314
        %v459 = vunpack.c.l.b16 %v315
        %v460 = vunpack.c.l.b16 %v316
        %v461 = vunpack.c.l.b16 %v317
        %v462 = vpack.c.b16 %v431, %v430
        %v463 = vpack.c.b16 %v433, %v432
        %v464 = vpack.c.b16 %v435, %v434
        %v465 = vpack.c.b16 %v437, %v436
        %v466 = vpack.c.b16 %v439, %v438
        %v467 = vpack.c.b16 %v441, %v440
        %v468 = vpack.c.b16 %v443, %v442
        %v469 = vpack.c.b16 %v445, %v444
        %v470 = vpack.c.b16 %v447, %v446
        %v471 = vpack.c.b16 %v449, %v448
        %v472 = vpack.c.b16 %v451, %v450
        %v473 = vpack.c.b16 %v453, %v452
        %v474 = vpack.c.b16 %v455, %v454
        %v475 = vpack.c.b16 %v457, %v456
        %v476 = vpack.c.b16 %v459, %v458
        %v477 = vpack.c.b16 %v461, %v460
        %494 = vmatpush.bf16.msra.mxu0 %v469
        %495 = vmatpush.bf16.msra.mxu0 %v468
        %496 = vmatpush.bf16.msra.mxu0 %v467
        %497 = vmatpush.bf16.msra.mxu0 %v466
        %498 = vmatpush.bf16.msra.mxu0 %v465
        %499 = vmatpush.bf16.msra.mxu0 %v464
        %500 = vmatpush.bf16.msra.mxu0 %v463
        %501 = vmatpush.bf16.msra.mxu0 %v462
        %502 = vmatmul.bf16.gmra.mxu0 %v366
        %v503 = vpop.f32.mrf.mxu0
        %v504 = vadd.f32 0.0, %v503
        %v505 = vpop.f32.mrf.mxu0
        %v506 = vadd.f32 0.0, %v505
        %507 = vmatmul.bf16.gmra.mxu0 %v368
        %v508 = vpop.f32.mrf.mxu0
        %v509 = vadd.f32 0.0, %v508
        %v510 = vpop.f32.mrf.mxu0
        %v511 = vadd.f32 0.0, %v510
        %512 = vmatmul.bf16.gmra.mxu0 %v370
        %v513 = vpop.f32.mrf.mxu0
        %v514 = vadd.f32 0.0, %v513
        %v515 = vpop.f32.mrf.mxu0
        %v516 = vadd.f32 0.0, %v515
        %517 = vmatmul.bf16.gmra.mxu0 %v372
        %v518 = vpop.f32.mrf.mxu0
        %v519 = vadd.f32 0.0, %v518
        %v520 = vpop.f32.mrf.mxu0
        %v521 = vadd.f32 0.0, %v520
        %522 = vmatmul.bf16.gmra.mxu0 %v374
        %v523 = vpop.f32.mrf.mxu0
        %v524 = vadd.f32 0.0, %v523
        %v525 = vpop.f32.mrf.mxu0
        %v526 = vadd.f32 0.0, %v525
        %527 = vmatmul.bf16.gmra.mxu0 %v376
        %v528 = vpop.f32.mrf.mxu0
        %v529 = vadd.f32 0.0, %v528
        %v530 = vpop.f32.mrf.mxu0
        %v531 = vadd.f32 0.0, %v530
        %532 = vmatmul.bf16.gmra.mxu0 %v378
        %v533 = vpop.f32.mrf.mxu0
        %v534 = vadd.f32 0.0, %v533
        %v535 = vpop.f32.mrf.mxu0
        %v536 = vadd.f32 0.0, %v535
        %537 = vmatmul.bf16.gmra.mxu0 %v380
        %v538 = vpop.f32.mrf.mxu0
        %v539 = vadd.f32 0.0, %v538
        %v540 = vpop.f32.mrf.mxu0
        %v541 = vadd.f32 0.0, %v540
        %542 = vdwg.mxu0
        %543 = vmatpush.bf16.msra.mxu0 %v477
        %544 = vmatpush.bf16.msra.mxu0 %v476
        %545 = vmatpush.bf16.msra.mxu0 %v475
        %546 = vmatpush.bf16.msra.mxu0 %v474
        %547 = vmatpush.bf16.msra.mxu0 %v473
        %548 = vmatpush.bf16.msra.mxu0 %v472
        %549 = vmatpush.bf16.msra.mxu0 %v471
        %550 = vmatpush.bf16.msra.mxu0 %v470
        %551 = vmatmul.bf16.gmra.mxu0 %v367
        %v552 = vpop.f32.mrf.mxu0
        %v553 = vadd.f32 %v504, %v552
        %v554 = vpop.f32.mrf.mxu0
        %v555 = vadd.f32 %v506, %v554
        %556 = vmatmul.bf16.gmra.mxu0 %v369
        %v557 = vpop.f32.mrf.mxu0
        %v558 = vadd.f32 %v509, %v557
        %v559 = vpop.f32.mrf.mxu0
        %v560 = vadd.f32 %v511, %v559
        %561 = vmatmul.bf16.gmra.mxu0 %v371
        %v562 = vpop.f32.mrf.mxu0
        %v563 = vadd.f32 %v514, %v562
        %v564 = vpop.f32.mrf.mxu0
        %v565 = vadd.f32 %v516, %v564
        %566 = vmatmul.bf16.gmra.mxu0 %v373
        %v567 = vpop.f32.mrf.mxu0
        %v568 = vadd.f32 %v519, %v567
        %v569 = vpop.f32.mrf.mxu0
        %v570 = vadd.f32 %v521, %v569
        %571 = vmatmul.bf16.gmra.mxu0 %v375
        %v572 = vpop.f32.mrf.mxu0
        %v573 = vadd.f32 %v524, %v572
        %v574 = vpop.f32.mrf.mxu0
        %v575 = vadd.f32 %v526, %v574
        %576 = vmatmul.bf16.gmra.mxu0 %v377
        %v577 = vpop.f32.mrf.mxu0
        %v578 = vadd.f32 %v529, %v577
        %v579 = vpop.f32.mrf.mxu0
        %v580 = vadd.f32 %v531, %v579
        %581 = vmatmul.bf16.gmra.mxu0 %v379
        %v582 = vpop.f32.mrf.mxu0
        %v583 = vadd.f32 %v534, %v582
        %v584 = vpop.f32.mrf.mxu0
        %v585 = vadd.f32 %v536, %v584
        %586 = vmatmul.bf16.gmra.mxu0 %v381
        %v587 = vpop.f32.mrf.mxu0
        %v588 = vadd.f32 %v539, %v587
        %v589 = vpop.f32.mrf.mxu0
        %v590 = vadd.f32 %v541, %v589
        %591 = vdwg.mxu0
        %v592 = vmax.f32 %v553, %v563
        %v593 = vmax.f32 %v555, %v565
        %v594 = vmax.f32 %v558, %v568
        %v595 = vmax.f32 %v560, %v570
        %v596 = vmax.f32 %v573, %v583
        %v597 = vmax.f32 %v575, %v585
        %v598 = vmax.f32 %v578, %v588
        %v599 = vmax.f32 %v580, %v590
        %v600 = vmax.f32 %v592, %v596
        %v601 = vmax.f32 %v593, %v597
        %v602 = vmax.f32 %v594, %v598
        %v603 = vmax.f32 %v595, %v599
        %v604 = vld [vmem:[%s2] sm:$0x1]
        %v606 = vperm.slane %v604, 0
        %v608 = vadd.f32 %v600, %v606
        %v609 = vadd.f32 %v601, %v606
        %v610 = vadd.f32 %v602, %v606
        %v611 = vadd.f32 %v603, %v606
        %v612 = vmax.f32 %v608, 0.0
        %v613 = vmax.f32 %v609, 0.0
        %v614 = vmax.f32 %v610, 0.0
        %v615 = vmax.f32 %v611, 0.0
        %v616 = vpack.c.bf16 %v612, %v612
        %v617 = vpack.c.bf16 %v613, %v613
        %v618 = vpack.c.bf16 %v614, %v614
        %v619 = vpack.c.bf16 %v615, %v615
        %620 = vst [vmem:[%s268] sm:$0xf] %v616
        %621 = vst [vmem:[%s268 + $0x4] sm:$0xf] %v617
        %622 = vst [vmem:[%s268 + $0x8] sm:$0xf] %v618
        %623 = vst [vmem:[%s268 + $0xc] sm:$0xf] %v619
        %s624 = smul.u32 4, %s14
        %p625 = scmp.lt.s32.totalorder %s624, 7
        %s626 = scalar_select %p625, %s624, 7
        %s627 = smul.addr %s626, 4
        %s628 = scalar_lea.vmem %s3, %s627
        // Predicated region
        $region71: #{lenet4_forward.4} parent=65 // pred_check
          %p629 = pneg %p100
        $region72: #{lenet4_forward.4} parent=65 // pred_check_branch
          %631 = sbr.rel (%p629) target = $region74
        $region73: #{lenet4_forward.4} parent=65 // pred_region
          %s632 = smul.u32 4, %s14
        $region74: #{lenet4_forward.4} parent=65 // pred_fallthru
          _
      $region66: #{lenet4_forward.4} parent=5 // pred_fallthru
        _
      %p633 = scmp.le.s32.totalorder 2, %s9
      // Predicated region
      $region75: #{lenet4_forward.4} parent=5 // pred_check
        %p634 = pneg %p633
      $region76: #{lenet4_forward.4} parent=5 // pred_check_branch
        %636 = sbr.rel (%p634) target = $region78
      $region77: #{lenet4_forward.4} parent=5 // pred_region
        %s637 = ssub.s32 %s9, 2
        // Predicated region
        $region79: #{lenet4_forward.4} parent=77 // pred_check
          %p638 = pneg %p106
        $region80: #{lenet4_forward.4} parent=77 // pred_check_branch
          %640 = sbr.rel (%p638) target = $region82
        $region81: #{lenet4_forward.4} parent=77 // pred_region
          %s641 = smul.u32 4, %s15
          %p642 = scmp.lt.s32.totalorder %s641, 7
          %s643 = scalar_select %p642, %s641, 7
          %s644 = smul.addr %s643, 4
          %s645 = scalar_lea.vmem %s3, %s644
        $region82: #{lenet4_forward.4} parent=77 // pred_fallthru
          _
      $region78: #{lenet4_forward.4} parent=5 // pred_fallthru
        _
    $region6: #{lenet4_forward.4} parent=1 // loop_footer
      %s13 = sadd.s32 1, %s9
    $region7: #{lenet4_forward.4} parent=1 // loop_footer_branch
      %8 = sbr.rel target = $region3
    $region8: #{lenet4_forward.4} parent=1 // loop_exit
      _

// kernel: lenet4_forward.5
$region0: #{lenet4_forward.5}
  #allocation0 [shape = 'u32[]', space=smem, size = 0x4, offset = 0x4, fixed_abs, tag = 'smem constant byte address 0x4 - core index']
  #allocation1 [shape = 'u32[72,128]{1,0:T(1,128)}', space=vmem, size = 0x9000, scoped, tag = 'internal scratch']
  %s0 = inlined_call_operand.vmem [shape: bf16[8,512], index: 0, kind: input, shape index: {}]
  %s1 = inlined_call_operand.vmem [shape: bf16[512,128], index: 1, kind: input, shape index: {}]
  %s2 = inlined_call_operand.vmem [shape: f32[1,128], index: 2, kind: input, shape index: {}]
  %s3 = inlined_call_operand.vmem [shape: bf16[128,128], index: 3, kind: input, shape index: {}]
  %s4 = inlined_call_operand.vmem [shape: f32[1,128], index: 4, kind: input, shape index: {}]
  %s5 = inlined_call_operand.vmem [shape: f32[8,128], index: 5, kind: output, shape index: {}]
  %s6 = sld [smem:[#allocation0]]
  $region30: #{lenet4_forward.5} parent=0
    _
  %s8 = ssub.s32 1, %s6
  %s9 = scalar_select 0, %s8, %s6
  // Predicated region
  $region2: #{lenet4_forward.5} parent=0 // pred_check
    _
  $region3: #{lenet4_forward.5} parent=0 // pred_check_branch
    %11 = sbr.rel (0) target = $region5
  $region4: #{lenet4_forward.5} parent=0 // pred_region
    _
  $region5: #{lenet4_forward.5} parent=0 // pred_fallthru
    _
  // Predicated region
  $region6: #{lenet4_forward.5} parent=0 // pred_check
    _
  $region7: #{lenet4_forward.5} parent=0 // pred_check_branch
    %13 = sbr.rel (0) target = $region9
  $region8: #{lenet4_forward.5} parent=0 // pred_region
    _
  $region9: #{lenet4_forward.5} parent=0 // pred_fallthru
    _
  // Predicated region
  $region10: #{lenet4_forward.5} parent=0 // pred_check
    _
  $region11: #{lenet4_forward.5} parent=0 // pred_check_branch
    %15 = sbr.rel (0) target = $region13
  $region12: #{lenet4_forward.5} parent=0 // pred_region
    _
  $region13: #{lenet4_forward.5} parent=0 // pred_fallthru
    _
  // Predicated region
  $region14: #{lenet4_forward.5} parent=0 // pred_check
    _
  $region15: #{lenet4_forward.5} parent=0 // pred_check_branch
    %17 = sbr.rel (0) target = $region17
  $region16: #{lenet4_forward.5} parent=0 // pred_region
    _
  $region17: #{lenet4_forward.5} parent=0 // pred_fallthru
    _
  // Predicated region
  $region18: #{lenet4_forward.5} parent=0 // pred_check
    _
  $region19: #{lenet4_forward.5} parent=0 // pred_check_branch
    %19 = sbr.rel (0) target = $region21
  $region20: #{lenet4_forward.5} parent=0 // pred_region
    _
  $region21: #{lenet4_forward.5} parent=0 // pred_fallthru
    _
  %v20 = vld [vmem:[%s0] sm:$0xff]
  %v21 = vld [vmem:[%s0 + $0x8] sm:$0xff]
  %v22 = vld [vmem:[%s1] sm:$0xf]
  %v23 = vld [vmem:[%s1 + $0x4] sm:$0xf]
  %v24 = vld [vmem:[%s1 + $0x8] sm:$0xf]
  %v25 = vld [vmem:[%s1 + $0xc] sm:$0xf]
  %v26 = vld [vmem:[%s1 + $0x10] sm:$0xf]
  %v27 = vld [vmem:[%s1 + $0x14] sm:$0xf]
  %v28 = vld [vmem:[%s1 + $0x18] sm:$0xf]
  %v29 = vld [vmem:[%s1 + $0x1c] sm:$0xf]
  %v30 = vld [vmem:[%s1 + $0x20] sm:$0xf]
  %v31 = vld [vmem:[%s1 + $0x24] sm:$0xf]
  %v32 = vld [vmem:[%s1 + $0x28] sm:$0xf]
  %v33 = vld [vmem:[%s1 + $0x2c] sm:$0xf]
  %v34 = vld [vmem:[%s1 + $0x30] sm:$0xf]
  %v35 = vld [vmem:[%s1 + $0x34] sm:$0xf]
  %v36 = vld [vmem:[%s1 + $0x38] sm:$0xf]
  %v37 = vld [vmem:[%s1 + $0x3c] sm:$0xf]
  %v38 = vld [vmem:[%s1 + $0x40] sm:$0xf]
  %v39 = vld [vmem:[%s1 + $0x44] sm:$0xf]
  %v40 = vld [vmem:[%s1 + $0x48] sm:$0xf]
  %v41 = vld [vmem:[%s1 + $0x4c] sm:$0xf]
  %v42 = vld [vmem:[%s1 + $0x50] sm:$0xf]
  %v43 = vld [vmem:[%s1 + $0x54] sm:$0xf]
  %v44 = vld [vmem:[%s1 + $0x58] sm:$0xf]
  %v45 = vld [vmem:[%s1 + $0x5c] sm:$0xf]
  %v46 = vld [vmem:[%s1 + $0x60] sm:$0xf]
  %v47 = vld [vmem:[%s1 + $0x64] sm:$0xf]
  %v48 = vld [vmem:[%s1 + $0x68] sm:$0xf]
  %v49 = vld [vmem:[%s1 + $0x6c] sm:$0xf]
  %v50 = vld [vmem:[%s1 + $0x70] sm:$0xf]
  %v51 = vld [vmem:[%s1 + $0x74] sm:$0xf]
  %v52 = vld [vmem:[%s1 + $0x78] sm:$0xf]
  %v53 = vld [vmem:[%s1 + $0x7c] sm:$0xf]
  %v54 = vld [vmem:[%s1 + $0x80] sm:$0xf]
  %v55 = vld [vmem:[%s1 + $0x84] sm:$0xf]
  %v56 = vld [vmem:[%s1 + $0x88] sm:$0xf]
  %v57 = vld [vmem:[%s1 + $0x8c] sm:$0xf]
  %v58 = vld [vmem:[%s1 + $0x90] sm:$0xf]
  %v59 = vld [vmem:[%s1 + $0x94] sm:$0xf]
  %v60 = vld [vmem:[%s1 + $0x98] sm:$0xf]
  %v61 = vld [vmem:[%s1 + $0x9c] sm:$0xf]
  %v62 = vld [vmem:[%s1 + $0xa0] sm:$0xf]
  %v63 = vld [vmem:[%s1 + $0xa4] sm:$0xf]
  %v64 = vld [vmem:[%s1 + $0xa8] sm:$0xf]
  %v65 = vld [vmem:[%s1 + $0xac] sm:$0xf]
  %v66 = vld [vmem:[%s1 + $0xb0] sm:$0xf]
  %v67 = vld [vmem:[%s1 + $0xb4] sm:$0xf]
  %v68 = vld [vmem:[%s1 + $0xb8] sm:$0xf]
  %v69 = vld [vmem:[%s1 + $0xbc] sm:$0xf]
  %v70 = vld [vmem:[%s1 + $0xc0] sm:$0xf]
  %v71 = vld [vmem:[%s1 + $0xc4] sm:$0xf]
  %v72 = vld [vmem:[%s1 + $0xc8] sm:$0xf]
  %v73 = vld [vmem:[%s1 + $0xcc] sm:$0xf]
  %v74 = vld [vmem:[%s1 + $0xd0] sm:$0xf]
  %v75 = vld [vmem:[%s1 + $0xd4] sm:$0xf]
  %v76 = vld [vmem:[%s1 + $0xd8] sm:$0xf]
  %v77 = vld [vmem:[%s1 + $0xdc] sm:$0xf]
  %v78 = vld [vmem:[%s1 + $0xe0] sm:$0xf]
  %v79 = vld [vmem:[%s1 + $0xe4] sm:$0xf]
  %v80 = vld [vmem:[%s1 + $0xe8] sm:$0xf]
  %v81 = vld [vmem:[%s1 + $0xec] sm:$0xf]
  %v82 = vld [vmem:[%s1 + $0xf0] sm:$0xf]
  %v83 = vld [vmem:[%s1 + $0xf4] sm:$0xf]
  %v84 = vld [vmem:[%s1 + $0xf8] sm:$0xf]
  %v85 = vld [vmem:[%s1 + $0xfc] sm:$0xf]
  %v86 = vld [vmem:[%s2] sm:$0x1]
  %v88 = vperm.slane %v86, 0
  %v92 = vunpack.c.l.b16 %v20
  %v93 = vunpack.c.h.b16 %v20
  %v94 = vunpack.c.l.b16 %v21
  %v95 = vunpack.c.h.b16 %v21
  %v96 = vpack.c.b16 %v92, %v92
  %v97 = vpack.c.b16 %v93, %v93
  %v98 = vpack.c.b16 %v94, %v94
  %v99 = vpack.c.b16 %v95, %v95
  %v168 = vunpack.c.l.b16 %v22
  %v169 = vunpack.c.l.b16 %v23
  %v170 = vunpack.c.l.b16 %v24
  %v171 = vunpack.c.l.b16 %v25
  %v172 = vunpack.c.l.b16 %v26
  %v173 = vunpack.c.l.b16 %v27
  %v174 = vunpack.c.l.b16 %v28
  %v175 = vunpack.c.l.b16 %v29
  %v176 = vunpack.c.l.b16 %v30
  %v177 = vunpack.c.l.b16 %v31
  %v178 = vunpack.c.l.b16 %v32
  %v179 = vunpack.c.l.b16 %v33
  %v180 = vunpack.c.l.b16 %v34
  %v181 = vunpack.c.l.b16 %v35
  %v182 = vunpack.c.l.b16 %v36
  %v183 = vunpack.c.l.b16 %v37
  %v184 = vunpack.c.l.b16 %v38
  %v185 = vunpack.c.l.b16 %v39
  %v186 = vunpack.c.l.b16 %v40
  %v187 = vunpack.c.l.b16 %v41
  %v188 = vunpack.c.l.b16 %v42
  %v189 = vunpack.c.l.b16 %v43
  %v190 = vunpack.c.l.b16 %v44
  %v191 = vunpack.c.l.b16 %v45
  %v192 = vunpack.c.l.b16 %v46
  %v193 = vunpack.c.l.b16 %v47
  %v194 = vunpack.c.l.b16 %v48
  %v195 = vunpack.c.l.b16 %v49
  %v196 = vunpack.c.l.b16 %v50
  %v197 = vunpack.c.l.b16 %v51
  %v198 = vunpack.c.l.b16 %v52
  %v199 = vunpack.c.l.b16 %v53
  %v200 = vunpack.c.l.b16 %v54
  %v201 = vunpack.c.l.b16 %v55
  %v202 = vunpack.c.l.b16 %v56
  %v203 = vunpack.c.l.b16 %v57
  %v204 = vunpack.c.l.b16 %v58
  %v205 = vunpack.c.l.b16 %v59
  %v206 = vunpack.c.l.b16 %v60
  %v207 = vunpack.c.l.b16 %v61
  %v208 = vunpack.c.l.b16 %v62
  %v209 = vunpack.c.l.b16 %v63
  %v210 = vunpack.c.l.b16 %v64
  %v211 = vunpack.c.l.b16 %v65
  %v212 = vunpack.c.l.b16 %v66
  %v213 = vunpack.c.l.b16 %v67
  %v214 = vunpack.c.l.b16 %v68
  %v215 = vunpack.c.l.b16 %v69
  %v216 = vunpack.c.l.b16 %v70
  %v217 = vunpack.c.l.b16 %v71
  %v218 = vunpack.c.l.b16 %v72
  %v219 = vunpack.c.l.b16 %v73
  %v220 = vunpack.c.l.b16 %v74
  %v221 = vunpack.c.l.b16 %v75
  %v222 = vunpack.c.l.b16 %v76
  %v223 = vunpack.c.l.b16 %v77
  %v224 = vunpack.c.l.b16 %v78
  %v225 = vunpack.c.l.b16 %v79
  %v226 = vunpack.c.l.b16 %v80
  %v227 = vunpack.c.l.b16 %v81
  %v228 = vunpack.c.l.b16 %v82
  %v229 = vunpack.c.l.b16 %v83
  %v230 = vunpack.c.l.b16 %v84
  %v231 = vunpack.c.l.b16 %v85
  %v232 = vpack.c.b16 %v169, %v168
  %v233 = vpack.c.b16 %v171, %v170
  %v234 = vpack.c.b16 %v173, %v172
  %v235 = vpack.c.b16 %v175, %v174
  %v236 = vpack.c.b16 %v177, %v176
  %v237 = vpack.c.b16 %v179, %v178
  %v238 = vpack.c.b16 %v181, %v180
  %v239 = vpack.c.b16 %v183, %v182
  %v240 = vpack.c.b16 %v185, %v184
  %v241 = vpack.c.b16 %v187, %v186
  %v242 = vpack.c.b16 %v189, %v188
  %v243 = vpack.c.b16 %v191, %v190
  %v244 = vpack.c.b16 %v193, %v192
  %v245 = vpack.c.b16 %v195, %v194
  %v246 = vpack.c.b16 %v197, %v196
  %v247 = vpack.c.b16 %v199, %v198
  %v248 = vpack.c.b16 %v201, %v200
  %v249 = vpack.c.b16 %v203, %v202
  %v250 = vpack.c.b16 %v205, %v204
  %v251 = vpack.c.b16 %v207, %v206
  %v252 = vpack.c.b16 %v209, %v208
  %v253 = vpack.c.b16 %v211, %v210
  %v254 = vpack.c.b16 %v213, %v212
  %v255 = vpack.c.b16 %v215, %v214
  %v256 = vpack.c.b16 %v217, %v216
  %v257 = vpack.c.b16 %v219, %v218
  %v258 = vpack.c.b16 %v221, %v220
  %v259 = vpack.c.b16 %v223, %v222
  %v260 = vpack.c.b16 %v225, %v224
  %v261 = vpack.c.b16 %v227, %v226
  %v262 = vpack.c.b16 %v229, %v228
  %v263 = vpack.c.b16 %v231, %v230
  %296 = vmatpush.bf16.msra.mxu0 %v239
  %297 = vmatpush.bf16.msra.mxu0 %v238
  %298 = vmatpush.bf16.msra.mxu0 %v237
  %299 = vmatpush.bf16.msra.mxu0 %v236
  %300 = vmatpush.bf16.msra.mxu0 %v235
  %301 = vmatpush.bf16.msra.mxu0 %v234
  %302 = vmatpush.bf16.msra.mxu0 %v233
  %303 = vmatpush.bf16.msra.mxu0 %v232
  %304 = vmatmul.bf16.gmra.mxu0 %v96
  %v305 = vpop.f32.mrf.mxu0
  %v306 = vadd.f32 %v88, %v305
  %v307 = vpop.f32.mrf.mxu0
  %308 = vdwg.mxu0
  %309 = vmatpush.bf16.msra.mxu0 %v247
  %310 = vmatpush.bf16.msra.mxu0 %v246
  %311 = vmatpush.bf16.msra.mxu0 %v245
  %312 = vmatpush.bf16.msra.mxu0 %v244
  %313 = vmatpush.bf16.msra.mxu0 %v243
  %314 = vmatpush.bf16.msra.mxu0 %v242
  %315 = vmatpush.bf16.msra.mxu0 %v241
  %316 = vmatpush.bf16.msra.mxu0 %v240
  %317 = vmatmul.bf16.gmra.mxu0 %v97
  %v318 = vpop.f32.mrf.mxu0
  %v319 = vadd.f32 %v306, %v318
  %v320 = vpop.f32.mrf.mxu0
  %321 = vdwg.mxu0
  %322 = vmatpush.bf16.msra.mxu0 %v255
  %323 = vmatpush.bf16.msra.mxu0 %v254
  %324 = vmatpush.bf16.msra.mxu0 %v253
  %325 = vmatpush.bf16.msra.mxu0 %v252
  %326 = vmatpush.bf16.msra.mxu0 %v251
  %327 = vmatpush.bf16.msra.mxu0 %v250
  %328 = vmatpush.bf16.msra.mxu0 %v249
  %329 = vmatpush.bf16.msra.mxu0 %v248
  %330 = vmatmul.bf16.gmra.mxu0 %v98
  %v331 = vpop.f32.mrf.mxu0
  %v332 = vadd.f32 %v319, %v331
  %v333 = vpop.f32.mrf.mxu0
  %334 = vdwg.mxu0
  %335 = vmatpush.bf16.msra.mxu0 %v263
  %336 = vmatpush.bf16.msra.mxu0 %v262
  %337 = vmatpush.bf16.msra.mxu0 %v261
  %338 = vmatpush.bf16.msra.mxu0 %v260
  %339 = vmatpush.bf16.msra.mxu0 %v259
  %340 = vmatpush.bf16.msra.mxu0 %v258
  %341 = vmatpush.bf16.msra.mxu0 %v257
  %342 = vmatpush.bf16.msra.mxu0 %v256
  %343 = vmatmul.bf16.gmra.mxu0 %v99
  %v344 = vpop.f32.mrf.mxu0
  %v345 = vadd.f32 %v332, %v344
  %v346 = vpop.f32.mrf.mxu0
  %347 = vdwg.mxu0
  %v348 = vmax.f32 %v345, 0.0
  %v349 = vpack.c.bf16 %v348, %v348
  %v350 = vld [vmem:[%s3] sm:$0xf]
  %v351 = vld [vmem:[%s3 + $0x4] sm:$0xf]
  %v352 = vld [vmem:[%s3 + $0x8] sm:$0xf]
  %v353 = vld [vmem:[%s3 + $0xc] sm:$0xf]
  %v354 = vld [vmem:[%s3 + $0x10] sm:$0xf]
  %v355 = vld [vmem:[%s3 + $0x14] sm:$0xf]
  %v356 = vld [vmem:[%s3 + $0x18] sm:$0xf]
  %v357 = vld [vmem:[%s3 + $0x1c] sm:$0xf]
  %v358 = vld [vmem:[%s3 + $0x20] sm:$0xf]
  %v359 = vld [vmem:[%s3 + $0x24] sm:$0xf]
  %v360 = vld [vmem:[%s3 + $0x28] sm:$0xf]
  %v361 = vld [vmem:[%s3 + $0x2c] sm:$0xf]
  %v362 = vld [vmem:[%s3 + $0x30] sm:$0xf]
  %v363 = vld [vmem:[%s3 + $0x34] sm:$0xf]
  %v364 = vld [vmem:[%s3 + $0x38] sm:$0xf]
  %v365 = vld [vmem:[%s3 + $0x3c] sm:$0xf]
  %v366 = vld [vmem:[%s4] sm:$0x1]
  %v368 = vperm.slane %v366, 0
  %v386 = vunpack.c.l.b16 %v350
  %v387 = vunpack.c.l.b16 %v351
  %v388 = vunpack.c.l.b16 %v352
  %v389 = vunpack.c.l.b16 %v353
  %v390 = vunpack.c.l.b16 %v354
  %v391 = vunpack.c.l.b16 %v355
  %v392 = vunpack.c.l.b16 %v356
  %v393 = vunpack.c.l.b16 %v357
  %v394 = vunpack.c.l.b16 %v358
  %v395 = vunpack.c.l.b16 %v359
  %v396 = vunpack.c.l.b16 %v360
  %v397 = vunpack.c.l.b16 %v361
  %v398 = vunpack.c.l.b16 %v362
  %v399 = vunpack.c.l.b16 %v363
  %v400 = vunpack.c.l.b16 %v364
  %v401 = vunpack.c.l.b16 %v365
  %v402 = vpack.c.b16 %v387, %v386
  %v403 = vpack.c.b16 %v389, %v388
  %v404 = vpack.c.b16 %v391, %v390
  %v405 = vpack.c.b16 %v393, %v392
  %v406 = vpack.c.b16 %v395, %v394
  %v407 = vpack.c.b16 %v397, %v396
  %v408 = vpack.c.b16 %v399, %v398
  %v409 = vpack.c.b16 %v401, %v400
  %418 = vmatpush.bf16.msra.mxu0 %v409
  %419 = vmatpush.bf16.msra.mxu0 %v408
  %420 = vmatpush.bf16.msra.mxu0 %v407
  %421 = vmatpush.bf16.msra.mxu0 %v406
  %422 = vmatpush.bf16.msra.mxu0 %v405
  %423 = vmatpush.bf16.msra.mxu0 %v404
  %424 = vmatpush.bf16.msra.mxu0 %v403
  %425 = vmatpush.bf16.msra.mxu0 %v402
  %426 = vmatmul.bf16.gmra.mxu0 %v349
  %v427 = vpop.f32.mrf.mxu0
  %v428 = vadd.f32 %v368, %v427
  %v429 = vpop.f32.mrf.mxu0
  %430 = vdwg.mxu0
  %431 = vst [vmem:[%s5] sm:$0xff] %v428
  // Predicated region
  $region22: #{lenet4_forward.5} parent=0 // pred_check
    _
  $region23: #{lenet4_forward.5} parent=0 // pred_check_branch
    %433 = sbr.rel (0) target = $region25
  $region24: #{lenet4_forward.5} parent=0 // pred_region
    _
  $region25: #{lenet4_forward.5} parent=0 // pred_fallthru
    _
  // Predicated region
  $region26: #{lenet4_forward.5} parent=0 // pred_check
    _
  $region27: #{lenet4_forward.5} parent=0 // pred_check_branch
    %435 = sbr.rel (0) target = $region29
  $region28: #{lenet4_forward.5} parent=0 // pred_region
    _
  $region29: #{lenet4_forward.5} parent=0 // pred_fallthru
    _

</llo_original>
